<compile_context>
chip_gen: v7x
topology: tpu7x:2x2x1
jax: 0.10.0
libtpu: 0.0.40
codegen_flags: <defaults>
</compile_context>

<pallas_src>
import jax
import jax.numpy as jnp
from jax.experimental import pallas as pl
from jax.experimental.pallas import tpu as pltpu

BN_EPS = 1e-5
LANE = 128


def _round_up(n, m):
    return ((n + m - 1) // m) * m


# --------------------------------------------------------------------------- #
# Kernel
# --------------------------------------------------------------------------- #
def classifier_kernel(x_ref, w1_ref, b1_ref, w2_ref, b2_ref, w3_ref, b3_ref,
                      w4_ref, b4_ref, o_ref):
    h1_width = w2_ref.shape[0]            # 512: main-path hidden width
    x = x_ref[...]                        # (tb, K_pad), bf16

    # Fused first layer + shortcut:  x @ [W1' | Ws]  (f32 accumulation on MXU).
    h = jnp.dot(x, w1_ref[...], preferred_element_type=jnp.float32) + b1_ref[...]
    main = jnp.maximum(h[:, :h1_width], 0.0)      # BN folded into W1'; Dropout = identity (eval)
    shortcut = h[:, h1_width:]                    # (tb, NC_pad); shortcut bias already added

    h = jnp.dot(main.astype(jnp.bfloat16), w2_ref[...],
                preferred_element_type=jnp.float32) + b2_ref[...]
    h = jnp.maximum(h, 0.0)

    h = jnp.dot(h.astype(jnp.bfloat16), w3_ref[...],
                preferred_element_type=jnp.float32) + b3_ref[...]
    h = jnp.maximum(h, 0.0)

    out = jnp.dot(h.astype(jnp.bfloat16), w4_ref[...],
                  preferred_element_type=jnp.float32) + b4_ref[...]

    o_ref[...] = (out + shortcut).astype(o_ref.dtype)


# --------------------------------------------------------------------------- #
# Parameter packing (BN fold + shortcut fusion + lane-dense padding + bf16)
# --------------------------------------------------------------------------- #
def _fold_bn(w, b, g, be, m, v):
    scale = g * jax.lax.rsqrt(v + BN_EPS)            # (1, N)
    return w * scale, (b - m) * scale + be


def pack_params(params, input_dim, num_classes):
    k_pad = _round_up(input_dim, LANE)
    nc_pad = _round_up(num_classes, LANE)

    w1, b1 = _fold_bn(params["w1"], params["b1"], params["g1"], params["be1"],
                      params["m1"], params["v1"])
    w2, b2 = _fold_bn(params["w2"], params["b2"], params["g2"], params["be2"],
                      params["m2"], params["v2"])
    w3, b3 = _fold_bn(params["w3"], params["b3"], params["g3"], params["be3"],
                      params["m3"], params["v3"])
    w4, b4 = params["w4"], params["b4"]
    ws, bs = params["ws"], params["bs"]

    h1 = w1.shape[1]                                  # 512

    # Fuse [W1' | Ws]; zero-pad K rows to k_pad and shortcut cols to nc_pad.
    w1c = jnp.zeros((k_pad, h1 + nc_pad), jnp.float32)
    w1c = w1c.at[:input_dim, :h1].set(w1)
    w1c = w1c.at[:input_dim, h1:h1 + num_classes].set(ws)
    b1c = jnp.zeros((1, h1 + nc_pad), jnp.float32)
    b1c = b1c.at[:, :h1].set(b1)
    b1c = b1c.at[:, h1:h1 + num_classes].set(bs)

    w4p = jnp.zeros((w4.shape[0], nc_pad), jnp.float32).at[:, :num_classes].set(w4)
    b4p = jnp.zeros((1, nc_pad), jnp.float32).at[:, :num_classes].set(b4)

    bf16 = jnp.bfloat16
    return dict(
        w1=w1c.astype(bf16), b1=b1c,
        w2=w2.astype(bf16), b2=b2,
        w3=w3.astype(bf16), b3=b3,
        w4=w4p.astype(bf16), b4=b4p,
        k_pad=k_pad, nc_pad=nc_pad, h1=h1,
    )


# --------------------------------------------------------------------------- #
# Wrapper
# --------------------------------------------------------------------------- #
def improved_class_classifier(x, params, *, block_batch=256):
    """x: (B, input_dim) float32.  params: raw (unfolded) module parameters."""
    B, input_dim = x.shape
    num_classes = params["w4"].shape[1]

    packed = pack_params(params, input_dim, num_classes)
    k_pad, nc_pad = packed["k_pad"], packed["nc_pad"]

    tb = min(block_batch, _round_up(B, 8))
    b_pad = _round_up(B, tb)
    x_pad = jnp.zeros((b_pad, k_pad), jnp.bfloat16)
    x_pad = x_pad.at[:B, :input_dim].set(x.astype(jnp.bfloat16))

    weight_args = (packed["w1"], packed["b1"], packed["w2"], packed["b2"],
                   packed["w3"], packed["b3"], packed["w4"], packed["b4"])

    def const_spec(shape):
        return pl.BlockSpec(shape, lambda i: (0, 0))     # VMEM-resident across steps

    out = pl.pallas_call(
        classifier_kernel,
        out_shape=jax.ShapeDtypeStruct((b_pad, nc_pad), jnp.float32),
        grid_spec=pltpu.PrefetchScalarGridSpec(
            num_scalar_prefetch=0,
            grid=(b_pad // tb,),
            in_specs=[pl.BlockSpec((tb, k_pad), lambda i: (i, 0))]
                     + [const_spec(a.shape) for a in weight_args],
            out_specs=pl.BlockSpec((tb, nc_pad), lambda i: (i, 0)),
        ),
        compiler_params=pltpu.CompilerParams(
            dimension_semantics=("parallel",)),
    )(x_pad, *weight_args)

    return out[:B, :num_classes]


# --------------------------------------------------------------------------- #
# Deterministic synthetic parameters (PyTorch-default-style init)
# --------------------------------------------------------------------------- #
def init_params(key, input_dim, num_classes):
    dims = [(input_dim, 512), (512, 256), (256, 128), (128, num_classes)]
    params = {}
    keys = jax.random.split(key, 32)
    ki = 0

    def linear(fan_in, fan_out):
        nonlocal ki
        bound = 1.0 / jnp.sqrt(fan_in)
        w = jax.random.uniform(keys[ki], (fan_in, fan_out), jnp.float32, -bound, bound)
        b = jax.random.uniform(keys[ki + 1], (1, fan_out), jnp.float32, -bound, bound)
        ki += 2
        return w, b

    for li, (fi, fo) in enumerate(dims, start=1):
        w, b = linear(fi, fo)
        params[f"w{li}"] = w
        params[f"b{li}"] = b

    # BatchNorm1d running-stat parameters, perturbed so the BN fold is exercised.
    for li, (_, fo) in enumerate(dims[:3], start=1):
        params[f"g{li}"] = 1.0 + 0.1 * jax.random.normal(keys[ki], (1, fo), jnp.float32)
        params[f"be{li}"] = 0.1 * jax.random.normal(keys[ki + 1], (1, fo), jnp.float32)
        params[f"m{li}"] = 0.05 * jax.random.normal(keys[ki + 2], (1, fo), jnp.float32)
        params[f"v{li}"] = 1.0 + 0.1 * jax.random.uniform(keys[ki + 3], (1, fo), jnp.float32)
        ki += 4

    ws, bs = linear(input_dim, num_classes)
    params["ws"] = ws
    params["bs"] = bs
    return params


# --------------------------------------------------------------------------- #
# References for correctness checking
# --------------------------------------------------------------------------- #
def _bn_relu(h, gamma, beta, mean, var):
    inv = jax.lax.rsqrt(var + BN_EPS)
    return jnp.maximum((h - mean) * inv * gamma + beta, 0.0)


def reference_forward(x, p):
    """Pure-JAX f32 reference of the original module (eval mode)."""
    h = x @ p["w1"] + p["b1"]
    h = _bn_relu(h, p["g1"], p["be1"], p["m1"], p["v1"])
    h = h @ p["w2"] + p["b2"]
    h = _bn_relu(h, p["g2"], p["be2"], p["m2"], p["v2"])
    h = h @ p["w3"] + p["b3"]
    h = _bn_relu(h, p["g3"], p["be3"], p["m3"], p["v3"])
    main = h @ p["w4"] + p["b4"]
    shortcut = x @ p["ws"] + p["bs"]
    return main + shortcut


def reference_packed(x, packed, input_dim, num_classes):
    """Plain-JAX mirror of the exact packed/bf16 math the kernel runs."""
    k_pad, h1 = packed["k_pad"], packed["h1"]
    xp = jnp.zeros((x.shape[0], k_pad), jnp.bfloat16)
    xp = xp.at[:, :input_dim].set(x.astype(jnp.bfloat16))
    h = jnp.dot(xp, packed["w1"], preferred_element_type=jnp.float32) + packed["b1"]
    main = jnp.maximum(h[:, :h1], 0.0)
    shortcut = h[:, h1:]
    h = jnp.dot(main.astype(jnp.bfloat16), packed["w2"],
                preferred_element_type=jnp.float32) + packed["b2"]
    h = jnp.maximum(h, 0.0)
    h = jnp.dot(h.astype(jnp.bfloat16), packed["w3"],
                preferred_element_type=jnp.float32) + packed["b3"]
    h = jnp.maximum(h, 0.0)
    out = jnp.dot(h.astype(jnp.bfloat16), packed["w4"],
                  preferred_element_type=jnp.float32) + packed["b4"]
    return (out + shortcut)[:, :num_classes]


if __name__ == "__main__":
    B, INPUT_DIM, NUM_CLASSES = 16, 64, 10

    key = jax.random.PRNGKey(0)
    kx, kp = jax.random.split(key)
    x = jax.random.normal(kx, (B, INPUT_DIM), jnp.float32)
    params = init_params(kp, INPUT_DIM, NUM_CLASSES)

    # block_batch=8 just to exercise a multi-step batch grid at this tiny demo
    # size; real workloads should keep the default (256) per the tuning notes.
    out = improved_class_classifier(x, params, block_batch=8)
    out = jax.block_until_ready(out)
    assert out.shape == (B, NUM_CLASSES)

    # (1) kernel vs. an exact JAX mirror of the packed bf16 math (tight tol)
    packed = pack_params(params, INPUT_DIM, NUM_CLASSES)
    ref_bf16 = reference_packed(x, packed, INPUT_DIM, NUM_CLASSES)
    assert jnp.allclose(out, ref_bf16, atol=2e-3, rtol=2e-3), "mismatch vs packed bf16 reference"

    # (2) kernel vs. the original f32 module semantics (loose tol: bf16 matmuls)
    ref_f32 = reference_forward(x, params)
    assert jnp.allclose(out, ref_f32, atol=7e-2, rtol=7e-2), "mismatch vs f32 module reference"

    print("KERNEL_OK")
</pallas_src>

<mosaic_0001>
module attributes {stable_mosaic.version = 11 : i64} {
  func.func @classifier_kernel(%arg0: i32, %arg1: memref<8x128xbf16, #tpu.memory_space<vmem>>, %arg2: memref<128x640xbf16, #tpu.memory_space<vmem>>, %arg3: memref<1x640xf32, #tpu.memory_space<vmem>>, %arg4: memref<512x256xbf16, #tpu.memory_space<vmem>>, %arg5: memref<1x256xf32, #tpu.memory_space<vmem>>, %arg6: memref<256x128xbf16, #tpu.memory_space<vmem>>, %arg7: memref<1x128xf32, #tpu.memory_space<vmem>>, %arg8: memref<128x128xbf16, #tpu.memory_space<vmem>>, %arg9: memref<1x128xf32, #tpu.memory_space<vmem>>, %arg10: memref<8x128xf32, #tpu.memory_space<vmem>>) attributes {dimension_semantics = [#tpu.dimension_semantics<parallel>], iteration_bounds = array<i64: 2>, scalar_prefetch = 0 : i64, scratch_operands = 0 : i64, tpu.core_type = #tpu.core_type<tc>, window_params = [{transform_indices = @transform_0, window_bounds = array<i64: 8, 128>}, {pipeline_mode = #tpu.pipeline_mode<synchronous>, transform_indices = @transform_1, window_bounds = array<i64: 128, 640>}, {pipeline_mode = #tpu.pipeline_mode<synchronous>, transform_indices = @transform_2, window_bounds = array<i64: 1, 640>}, {pipeline_mode = #tpu.pipeline_mode<synchronous>, transform_indices = @transform_3, window_bounds = array<i64: 512, 256>}, {pipeline_mode = #tpu.pipeline_mode<synchronous>, transform_indices = @transform_4, window_bounds = array<i64: 1, 256>}, {pipeline_mode = #tpu.pipeline_mode<synchronous>, transform_indices = @transform_5, window_bounds = array<i64: 256, 128>}, {pipeline_mode = #tpu.pipeline_mode<synchronous>, transform_indices = @transform_6, window_bounds = array<i64: 1, 128>}, {pipeline_mode = #tpu.pipeline_mode<synchronous>, transform_indices = @transform_7, window_bounds = array<i64: 128, 128>}, {pipeline_mode = #tpu.pipeline_mode<synchronous>, transform_indices = @transform_8, window_bounds = array<i64: 1, 128>}, {transform_indices = @transform_9, window_bounds = array<i64: 8, 128>}]} {
    %c0 = arith.constant 0 : index
    %c0_0 = arith.constant 0 : index
    %0 = vector.load %arg1[%c0, %c0_0] : memref<8x128xbf16, #tpu.memory_space<vmem>>, vector<8x128xbf16>
    %c0_1 = arith.constant 0 : index
    %c0_2 = arith.constant 0 : index
    %1 = vector.load %arg2[%c0_1, %c0_2] : memref<128x640xbf16, #tpu.memory_space<vmem>>, vector<128x640xbf16>
    %cst = arith.constant dense<0.000000e+00> : vector<8x640xf32>
    %2 = tpu.matmul %0, %1, %cst {dimension_numbers = #tpu.dot_dimension_numbers<[1], [0], [0], [1], [0, 0, 1, 1], [], []>} : vector<8x128xbf16>, vector<128x640xbf16>, vector<8x640xf32> -> vector<8x640xf32>
    %c0_3 = arith.constant 0 : index
    %c0_4 = arith.constant 0 : index
    %3 = vector.load %arg3[%c0_3, %c0_4] : memref<1x640xf32, #tpu.memory_space<vmem>>, vector<1x640xf32>
    %4 = vector.broadcast %3 : vector<1x640xf32> to vector<8x640xf32>
    %5 = arith.addf %2, %4 : vector<8x640xf32>
    %6 = vector.extract_strided_slice %5 {offsets = [0, 0], sizes = [8, 512], strides = [1, 1]} : vector<8x640xf32> to vector<8x512xf32>
    %cst_5 = arith.constant 0.000000e+00 : f32
    %7 = vector.broadcast %cst_5 : f32 to vector<8x512xf32>
    %8 = arith.maximumf %6, %7 : vector<8x512xf32>
    %9 = vector.extract_strided_slice %5 {offsets = [0, 512], sizes = [8, 128], strides = [1, 1]} : vector<8x640xf32> to vector<8x128xf32>
    %10 = arith.truncf %8 : vector<8x512xf32> to vector<8x512xbf16>
    %c0_6 = arith.constant 0 : index
    %c0_7 = arith.constant 0 : index
    %11 = vector.load %arg4[%c0_6, %c0_7] : memref<512x256xbf16, #tpu.memory_space<vmem>>, vector<512x256xbf16>
    %cst_8 = arith.constant dense<0.000000e+00> : vector<8x256xf32>
    %12 = tpu.matmul %10, %11, %cst_8 {dimension_numbers = #tpu.dot_dimension_numbers<[1], [0], [0], [1], [0, 0, 1, 1], [], []>} : vector<8x512xbf16>, vector<512x256xbf16>, vector<8x256xf32> -> vector<8x256xf32>
    %c0_9 = arith.constant 0 : index
    %c0_10 = arith.constant 0 : index
    %13 = vector.load %arg5[%c0_9, %c0_10] : memref<1x256xf32, #tpu.memory_space<vmem>>, vector<1x256xf32>
    %14 = vector.broadcast %13 : vector<1x256xf32> to vector<8x256xf32>
    %15 = arith.addf %12, %14 : vector<8x256xf32>
    %cst_11 = arith.constant 0.000000e+00 : f32
    %16 = vector.broadcast %cst_11 : f32 to vector<8x256xf32>
    %17 = arith.maximumf %15, %16 : vector<8x256xf32>
    %18 = arith.truncf %17 : vector<8x256xf32> to vector<8x256xbf16>
    %c0_12 = arith.constant 0 : index
    %c0_13 = arith.constant 0 : index
    %19 = vector.load %arg6[%c0_12, %c0_13] : memref<256x128xbf16, #tpu.memory_space<vmem>>, vector<256x128xbf16>
    %cst_14 = arith.constant dense<0.000000e+00> : vector<8x128xf32>
    %20 = tpu.matmul %18, %19, %cst_14 {dimension_numbers = #tpu.dot_dimension_numbers<[1], [0], [0], [1], [0, 0, 1, 1], [], []>} : vector<8x256xbf16>, vector<256x128xbf16>, vector<8x128xf32> -> vector<8x128xf32>
    %c0_15 = arith.constant 0 : index
    %c0_16 = arith.constant 0 : index
    %21 = vector.load %arg7[%c0_15, %c0_16] : memref<1x128xf32, #tpu.memory_space<vmem>>, vector<1x128xf32>
    %22 = vector.broadcast %21 : vector<1x128xf32> to vector<8x128xf32>
    %23 = arith.addf %20, %22 : vector<8x128xf32>
    %cst_17 = arith.constant 0.000000e+00 : f32
    %24 = vector.broadcast %cst_17 : f32 to vector<8x128xf32>
    %25 = arith.maximumf %23, %24 : vector<8x128xf32>
    %26 = arith.truncf %25 : vector<8x128xf32> to vector<8x128xbf16>
    %c0_18 = arith.constant 0 : index
    %c0_19 = arith.constant 0 : index
    %27 = vector.load %arg8[%c0_18, %c0_19] : memref<128x128xbf16, #tpu.memory_space<vmem>>, vector<128x128xbf16>
    %cst_20 = arith.constant dense<0.000000e+00> : vector<8x128xf32>
    %28 = tpu.matmul %26, %27, %cst_20 {dimension_numbers = #tpu.dot_dimension_numbers<[1], [0], [0], [1], [0, 0, 1, 1], [], []>} : vector<8x128xbf16>, vector<128x128xbf16>, vector<8x128xf32> -> vector<8x128xf32>
    %c0_21 = arith.constant 0 : index
    %c0_22 = arith.constant 0 : index
    %29 = vector.load %arg9[%c0_21, %c0_22] : memref<1x128xf32, #tpu.memory_space<vmem>>, vector<1x128xf32>
    %30 = vector.broadcast %29 : vector<1x128xf32> to vector<8x128xf32>
    %31 = arith.addf %28, %30 : vector<8x128xf32>
    %32 = arith.addf %31, %9 : vector<8x128xf32>
    %c0_23 = arith.constant 0 : index
    %c0_24 = arith.constant 0 : index
    %33 = vector.load %arg10[%c0_23, %c0_24] : memref<8x128xf32, #tpu.memory_space<vmem>>, vector<8x128xf32>
    tpu.vector_store %arg10[%c0_23, %c0_24], %32 {strides = array<i32>} : memref<8x128xf32, #tpu.memory_space<vmem>>, vector<8x128xf32>,
    return
  }
  func.func @transform_0(%arg0: i32) -> (i32, i32) {
    %c0_i32 = arith.constant 0 : i32
    %c0_i32_0 = arith.constant 0 : i32
    return %arg0, %c0_i32 : i32, i32
  }
  func.func @transform_1(%arg0: i32) -> (i32, i32) {
    %c0_i32 = arith.constant 0 : i32
    %c0_i32_0 = arith.constant 0 : i32
    %c0_i32_1 = arith.constant 0 : i32
    return %c0_i32, %c0_i32_0 : i32, i32
  }
  func.func @transform_2(%arg0: i32) -> (i32, i32) {
    %c0_i32 = arith.constant 0 : i32
    %c0_i32_0 = arith.constant 0 : i32
    %c0_i32_1 = arith.constant 0 : i32
    return %c0_i32, %c0_i32_0 : i32, i32
  }
  func.func @transform_3(%arg0: i32) -> (i32, i32) {
    %c0_i32 = arith.constant 0 : i32
    %c0_i32_0 = arith.constant 0 : i32
    %c0_i32_1 = arith.constant 0 : i32
    return %c0_i32, %c0_i32_0 : i32, i32
  }
  func.func @transform_4(%arg0: i32) -> (i32, i32) {
    %c0_i32 = arith.constant 0 : i32
    %c0_i32_0 = arith.constant 0 : i32
    %c0_i32_1 = arith.constant 0 : i32
    return %c0_i32, %c0_i32_0 : i32, i32
  }
  func.func @transform_5(%arg0: i32) -> (i32, i32) {
    %c0_i32 = arith.constant 0 : i32
    %c0_i32_0 = arith.constant 0 : i32
    %c0_i32_1 = arith.constant 0 : i32
    return %c0_i32, %c0_i32_0 : i32, i32
  }
  func.func @transform_6(%arg0: i32) -> (i32, i32) {
    %c0_i32 = arith.constant 0 : i32
    %c0_i32_0 = arith.constant 0 : i32
    %c0_i32_1 = arith.constant 0 : i32
    return %c0_i32, %c0_i32_0 : i32, i32
  }
  func.func @transform_7(%arg0: i32) -> (i32, i32) {
    %c0_i32 = arith.constant 0 : i32
    %c0_i32_0 = arith.constant 0 : i32
    %c0_i32_1 = arith.constant 0 : i32
    return %c0_i32, %c0_i32_0 : i32, i32
  }
  func.func @transform_8(%arg0: i32) -> (i32, i32) {
    %c0_i32 = arith.constant 0 : i32
    %c0_i32_0 = arith.constant 0 : i32
    %c0_i32_1 = arith.constant 0 : i32
    return %c0_i32, %c0_i32_0 : i32, i32
  }
  func.func @transform_9(%arg0: i32) -> (i32, i32) {
    %c0_i32 = arith.constant 0 : i32
    %c0_i32_0 = arith.constant 0 : i32
    return %arg0, %c0_i32 : i32, i32
  }
}

</mosaic_0001>

<llo_original>
// kernel: tpu_custom_call.1
$region0: #{tpu_custom_call.1}
  #allocation0 [shape = 'u32[]', space=smem, size = 0x4, offset = 0x4, fixed_abs, tag = 'smem constant byte address 0x4 - core index']
  #allocation1 [shape = 'u32[144,128]{1,0:T(1,128)}', space=vmem, size = 0x12000, scoped, tag = 'internal scratch']
  %s0 = inlined_call_operand.hbm [shape: bf16[16,128], index: 0, kind: input, shape index: {}]
  %s1 = inlined_call_operand.hbm [shape: bf16[128,640], index: 1, kind: input, shape index: {}]
  %s2 = inlined_call_operand.vmem [shape: f32[1,640], index: 2, kind: input, shape index: {}]
  %s3 = inlined_call_operand.hbm [shape: bf16[512,256], index: 3, kind: input, shape index: {}]
  %s4 = inlined_call_operand.vmem [shape: f32[1,256], index: 4, kind: input, shape index: {}]
  %s5 = inlined_call_operand.hbm [shape: bf16[256,128], index: 5, kind: input, shape index: {}]
  %s6 = inlined_call_operand.vmem [shape: f32[1,128], index: 6, kind: input, shape index: {}]
  %s7 = inlined_call_operand.hbm [shape: bf16[128,128], index: 7, kind: input, shape index: {}]
  %s8 = inlined_call_operand.vmem [shape: f32[1,128], index: 8, kind: input, shape index: {}]
  %s9 = inlined_call_operand.hbm [shape: f32[16,128], index: 9, kind: output, shape index: {}]
  %s10 = sld [smem:[#allocation0]]
  $region89: #{tpu_custom_call.1} parent=0
    _
  %s12 = ssub.s32 1, %s10
  %s13 = scalar_select 0, %s12, %s10
  $region1: #{tpu_custom_call.1} parent=0
    #allocation2 [shape = 'u8[4096]{0}', space=vmem, size = 0x1000, scoped, tag = 'input window, operand 0']
    #allocation3 [shape = 's32[2]{0}', space=sflag, size = 0x8, scoped, tag = 'scoped memory for tpu_custom_call.1']
    #allocation4 [shape = 's32[2]{0}', space=sflag, size = 0x8, scoped, tag = 'scoped memory for tpu_custom_call.1']
    #allocation5 [shape = 'u8[163840]{0}', space=vmem, size = 0x28000, scoped, tag = 'input window, operand 1, single buffered']
    #allocation6 [shape = 's32[1]{0}', space=sflag, size = 0x4, scoped, tag = 'scoped memory for tpu_custom_call.1']
    #allocation7 [shape = 'u8[262144]{0}', space=vmem, size = 0x40000, scoped, tag = 'input window, operand 3, single buffered']
    #allocation8 [shape = 'u8[65536]{0}', space=vmem, size = 0x10000, scoped, tag = 'input window, operand 5, single buffered']
    #allocation9 [shape = 's32[1]{0}', space=sflag, size = 0x4, scoped, tag = 'scoped memory for tpu_custom_call.1']
    #allocation10 [shape = 'u8[32768]{0}', space=vmem, size = 0x8000, scoped, tag = 'input window, operand 7, single buffered']
    #allocation11 [shape = 'u8[8192]{0}', space=vmem, size = 0x2000, scoped, tag = 'output window, operand 0']
    %14 = vsyncpa [#allocation3], 0
    %s15 = scalar_lea.sflag [#allocation3], 1
    %16 = vsyncpa %s15, 0
    %17 = vsyncpa [#allocation6], 0
    %18 = vsyncpa [#allocation9], 0
    %19 = vsyncpa [#allocation4], 0
    %s20 = scalar_lea.sflag [#allocation4], 1
    %21 = vsyncpa %s20, 0
    loop: start=0, step=1, limit=4
    $region2: #{tpu_custom_call.1} parent=1 // loop_pre_header
      _
    $region3: #{tpu_custom_call.1} parent=1 // loop_header
      %s23 = sphi 0, %s27
      %p24 = scmp.ge.s32.totalorder %s23, 4
      %s33 = sphi 0, %s35
      %s36 = sphi 0, %s33
      %s37 = sphi 0, %s36
      %s53 = sphi 0, %s37
      %s57 = sphi 0, %s57
      %s59 = sphi 0, %s57
      %s60 = sphi 0, %s59
      %s74 = sphi 0, %s60
      %s78 = sphi 0, %s78
      %s80 = sphi 0, %s78
      %s81 = sphi 0, %s80
      %s95 = sphi 0, %s81
      %s99 = sphi 0, %s99
      %s101 = sphi 0, %s99
      %s102 = sphi 0, %s101
      %s116 = sphi 0, %s102
      %s120 = sphi 0, %s120
      %s122 = sphi 0, %s120
      %s123 = sphi 0, %s122
      %s137 = sphi 0, %s123
      %s141 = sphi 0, %s141
      %s143 = sphi 0, %s141
      %s144 = sphi 0, %s143
      %s158 = sphi 0, %s144
      %s162 = sphi 0, %s162
      %s164 = sphi 0, %s162
      %s165 = sphi 0, %s164
      %s179 = sphi 0, %s165
      %s183 = sphi 0, %s183
      %s185 = sphi 0, %s183
      %s186 = sphi 0, %s185
      %s200 = sphi 0, %s186
      %s204 = sphi 0, %s204
      %s206 = sphi 0, %s204
      %s207 = sphi 0, %s206
      %s221 = sphi 0, %s207
      %s227 = sphi 0, %s229
      %s230 = sphi 0, %s227
      %s231 = sphi 0, %s230
      %s247 = sphi 0, %s231
    $region4: #{tpu_custom_call.1} parent=1 // loop_header_branch
      %26 = sbr.rel (%p24) target = $region8
    $region5: #{tpu_custom_call.1} parent=1 // loop_body
      %s28 = ssub.s32 %s23, 1
      %s29 = ssub.s32 %s23, 2
      %s30 = sadd.s32 %s23, 1
      %s31 = ssub.s32 %s23, %s30
      %p32 = scmp.eq.s32.totalorder %s31, 0
      %s34 = sadd.s32 %s33, 1
      %s35 = scalar_select %p32, %s33, %s34
      %p38 = pneg %p32
      %p39 = scmp.eq.s32.totalorder %s23, 1
      %p40 = por %p38, %p39
      %p41 = scmp.ne.s32.totalorder %s33, %s36
      %p42 = scmp.eq.s32.totalorder %s23, 0
      %p43 = por %p41, %p42
      %p44 = scmp.ne.s32.totalorder %s33, %s36
      %p45 = scmp.eq.s32.totalorder %s28, 1
      %p46 = por %p44, %p45
      %p47 = scmp.ne.s32.totalorder %s36, %s37
      %p48 = scmp.eq.s32.totalorder %s28, 0
      %p49 = por %p47, %p48
      %p50 = scmp.ne.s32.totalorder %s36, %s37
      %p51 = scmp.eq.s32.totalorder %s29, 1
      %p52 = por %p50, %p51
      %p54 = scmp.ne.s32.totalorder %s37, %s53
      %p55 = scmp.eq.s32.totalorder %s29, 0
      %p56 = por %p54, %p55
      %s58 = sadd.s32 %s57, 1
      %p61 = scmp.eq.s32.totalorder %s23, 1
      %p62 = scmp.ne.s32.totalorder %s57, %s59
      %p63 = scmp.eq.s32.totalorder %s23, 0
      %p64 = por %p62, %p63
      %p65 = scmp.ne.s32.totalorder %s57, %s59
      %p66 = scmp.eq.s32.totalorder %s28, 1
      %p67 = por %p65, %p66
      %p68 = scmp.ne.s32.totalorder %s59, %s60
      %p69 = scmp.eq.s32.totalorder %s28, 0
      %p70 = por %p68, %p69
      %p71 = scmp.ne.s32.totalorder %s59, %s60
      %p72 = scmp.eq.s32.totalorder %s29, 1
      %p73 = por %p71, %p72
      %p75 = scmp.ne.s32.totalorder %s60, %s74
      %p76 = scmp.eq.s32.totalorder %s29, 0
      %p77 = por %p75, %p76
      %s79 = sadd.s32 %s78, 1
      %p82 = scmp.eq.s32.totalorder %s23, 1
      %p83 = scmp.ne.s32.totalorder %s78, %s80
      %p84 = scmp.eq.s32.totalorder %s23, 0
      %p85 = por %p83, %p84
      %p86 = scmp.ne.s32.totalorder %s78, %s80
      %p87 = scmp.eq.s32.totalorder %s28, 1
      %p88 = por %p86, %p87
      %p89 = scmp.ne.s32.totalorder %s80, %s81
      %p90 = scmp.eq.s32.totalorder %s28, 0
      %p91 = por %p89, %p90
      %p92 = scmp.ne.s32.totalorder %s80, %s81
      %p93 = scmp.eq.s32.totalorder %s29, 1
      %p94 = por %p92, %p93
      %p96 = scmp.ne.s32.totalorder %s81, %s95
      %p97 = scmp.eq.s32.totalorder %s29, 0
      %p98 = por %p96, %p97
      %s100 = sadd.s32 %s99, 1
      %p103 = scmp.eq.s32.totalorder %s23, 1
      %p104 = scmp.ne.s32.totalorder %s99, %s101
      %p105 = scmp.eq.s32.totalorder %s23, 0
      %p106 = por %p104, %p105
      %p107 = scmp.ne.s32.totalorder %s99, %s101
      %p108 = scmp.eq.s32.totalorder %s28, 1
      %p109 = por %p107, %p108
      %p110 = scmp.ne.s32.totalorder %s101, %s102
      %p111 = scmp.eq.s32.totalorder %s28, 0
      %p112 = por %p110, %p111
      %p113 = scmp.ne.s32.totalorder %s101, %s102
      %p114 = scmp.eq.s32.totalorder %s29, 1
      %p115 = por %p113, %p114
      %p117 = scmp.ne.s32.totalorder %s102, %s116
      %p118 = scmp.eq.s32.totalorder %s29, 0
      %p119 = por %p117, %p118
      %s121 = sadd.s32 %s120, 1
      %p124 = scmp.eq.s32.totalorder %s23, 1
      %p125 = scmp.ne.s32.totalorder %s120, %s122
      %p126 = scmp.eq.s32.totalorder %s23, 0
      %p127 = por %p125, %p126
      %p128 = scmp.ne.s32.totalorder %s120, %s122
      %p129 = scmp.eq.s32.totalorder %s28, 1
      %p130 = por %p128, %p129
      %p131 = scmp.ne.s32.totalorder %s122, %s123
      %p132 = scmp.eq.s32.totalorder %s28, 0
      %p133 = por %p131, %p132
      %p134 = scmp.ne.s32.totalorder %s122, %s123
      %p135 = scmp.eq.s32.totalorder %s29, 1
      %p136 = por %p134, %p135
      %p138 = scmp.ne.s32.totalorder %s123, %s137
      %p139 = scmp.eq.s32.totalorder %s29, 0
      %p140 = por %p138, %p139
      %s142 = sadd.s32 %s141, 1
      %p145 = scmp.eq.s32.totalorder %s23, 1
      %p146 = scmp.ne.s32.totalorder %s141, %s143
      %p147 = scmp.eq.s32.totalorder %s23, 0
      %p148 = por %p146, %p147
      %p149 = scmp.ne.s32.totalorder %s141, %s143
      %p150 = scmp.eq.s32.totalorder %s28, 1
      %p151 = por %p149, %p150
      %p152 = scmp.ne.s32.totalorder %s143, %s144
      %p153 = scmp.eq.s32.totalorder %s28, 0
      %p154 = por %p152, %p153
      %p155 = scmp.ne.s32.totalorder %s143, %s144
      %p156 = scmp.eq.s32.totalorder %s29, 1
      %p157 = por %p155, %p156
      %p159 = scmp.ne.s32.totalorder %s144, %s158
      %p160 = scmp.eq.s32.totalorder %s29, 0
      %p161 = por %p159, %p160
      %s163 = sadd.s32 %s162, 1
      %p166 = scmp.eq.s32.totalorder %s23, 1
      %p167 = scmp.ne.s32.totalorder %s162, %s164
      %p168 = scmp.eq.s32.totalorder %s23, 0
      %p169 = por %p167, %p168
      %p170 = scmp.ne.s32.totalorder %s162, %s164
      %p171 = scmp.eq.s32.totalorder %s28, 1
      %p172 = por %p170, %p171
      %p173 = scmp.ne.s32.totalorder %s164, %s165
      %p174 = scmp.eq.s32.totalorder %s28, 0
      %p175 = por %p173, %p174
      %p176 = scmp.ne.s32.totalorder %s164, %s165
      %p177 = scmp.eq.s32.totalorder %s29, 1
      %p178 = por %p176, %p177
      %p180 = scmp.ne.s32.totalorder %s165, %s179
      %p181 = scmp.eq.s32.totalorder %s29, 0
      %p182 = por %p180, %p181
      %s184 = sadd.s32 %s183, 1
      %p187 = scmp.eq.s32.totalorder %s23, 1
      %p188 = scmp.ne.s32.totalorder %s183, %s185
      %p189 = scmp.eq.s32.totalorder %s23, 0
      %p190 = por %p188, %p189
      %p191 = scmp.ne.s32.totalorder %s183, %s185
      %p192 = scmp.eq.s32.totalorder %s28, 1
      %p193 = por %p191, %p192
      %p194 = scmp.ne.s32.totalorder %s185, %s186
      %p195 = scmp.eq.s32.totalorder %s28, 0
      %p196 = por %p194, %p195
      %p197 = scmp.ne.s32.totalorder %s185, %s186
      %p198 = scmp.eq.s32.totalorder %s29, 1
      %p199 = por %p197, %p198
      %p201 = scmp.ne.s32.totalorder %s186, %s200
      %p202 = scmp.eq.s32.totalorder %s29, 0
      %p203 = por %p201, %p202
      %s205 = sadd.s32 %s204, 1
      %p208 = scmp.eq.s32.totalorder %s23, 1
      %p209 = scmp.ne.s32.totalorder %s204, %s206
      %p210 = scmp.eq.s32.totalorder %s23, 0
      %p211 = por %p209, %p210
      %p212 = scmp.ne.s32.totalorder %s204, %s206
      %p213 = scmp.eq.s32.totalorder %s28, 1
      %p214 = por %p212, %p213
      %p215 = scmp.ne.s32.totalorder %s206, %s207
      %p216 = scmp.eq.s32.totalorder %s28, 0
      %p217 = por %p215, %p216
      %p218 = scmp.ne.s32.totalorder %s206, %s207
      %p219 = scmp.eq.s32.totalorder %s29, 1
      %p220 = por %p218, %p219
      %p222 = scmp.ne.s32.totalorder %s207, %s221
      %p223 = scmp.eq.s32.totalorder %s29, 0
      %p224 = por %p222, %p223
      %s225 = ssub.s32 %s23, %s30
      %p226 = scmp.eq.s32.totalorder %s225, 0
      %s228 = sadd.s32 %s227, 1
      %s229 = scalar_select %p226, %s227, %s228
      %p232 = pneg %p226
      %p233 = scmp.eq.s32.totalorder %s23, 1
      %p234 = por %p232, %p233
      %p235 = scmp.ne.s32.totalorder %s227, %s230
      %p236 = scmp.eq.s32.totalorder %s23, 0
      %p237 = por %p235, %p236
      %p238 = scmp.ne.s32.totalorder %s227, %s230
      %p239 = scmp.eq.s32.totalorder %s28, 1
      %p240 = por %p238, %p239
      %p241 = scmp.ne.s32.totalorder %s230, %s231
      %p242 = scmp.eq.s32.totalorder %s28, 0
      %p243 = por %p241, %p242
      %p244 = scmp.ne.s32.totalorder %s230, %s231
      %p245 = scmp.eq.s32.totalorder %s29, 1
      %p246 = por %p244, %p245
      %p248 = scmp.ne.s32.totalorder %s231, %s247
      %p249 = scmp.eq.s32.totalorder %s29, 0
      %p250 = por %p248, %p249
      %p251 = scmp.le.s32.totalorder 1, %s23
      %p252 = scmp.lt.s32.totalorder %s23, 3
      %p253 = pnand %p251, %p252
      %p254 = pneg %p253
      // Predicated region
      $region9: #{tpu_custom_call.1} parent=5 // pred_check
        _
      $region10: #{tpu_custom_call.1} parent=5 // pred_check_branch
        %256 = sbr.rel (%p253) target = $region12
      $region11: #{tpu_custom_call.1} parent=5 // pred_region
        %s257 = ssub.s32 %s23, 1
        // Predicated region
        $region13: #{tpu_custom_call.1} parent=11 // pred_check
          %p258 = pneg %p70
        $region14: #{tpu_custom_call.1} parent=11 // pred_check_branch
          %260 = sbr.rel (%p258) target = $region16
        $region15: #{tpu_custom_call.1} parent=11 // pred_region
          %s262 = ssub.s32 5120, 5120
          %263 = vsyncadd [#allocation6], %s262
          %s264 = sshll.u32 [#allocation5], 4
          %s265 = int_to_ptr.vmem [resolvable:$true] %s264
          %270 = dma.hbm_to_vmem [thread:$0]  %s1, 5120, %s265, [#allocation6], 320, 320, 20
        $region16: #{tpu_custom_call.1} parent=11 // pred_fallthru
          _
        // Predicated region
        $region17: #{tpu_custom_call.1} parent=11 // pred_check
          %p271 = pneg %p91
        $region18: #{tpu_custom_call.1} parent=11 // pred_check_branch
          %273 = sbr.rel (%p271) target = $region20
        $region19: #{tpu_custom_call.1} parent=11 // pred_region
          _
        $region20: #{tpu_custom_call.1} parent=11 // pred_fallthru
          _
        // Predicated region
        $region21: #{tpu_custom_call.1} parent=11 // pred_check
          %p274 = pneg %p112
        $region22: #{tpu_custom_call.1} parent=11 // pred_check_branch
          %276 = sbr.rel (%p274) target = $region24
        $region23: #{tpu_custom_call.1} parent=11 // pred_region
          %s278 = ssub.s32 8192, 8192
          %279 = vsyncadd [#allocation6], %s278
          %s280 = sshll.u32 [#allocation7], 4
          %s281 = int_to_ptr.vmem [resolvable:$true] %s280
          %286 = dma.hbm_to_vmem [thread:$0]  %s3, 8192, %s281, [#allocation6], 128, 128, 8
        $region24: #{tpu_custom_call.1} parent=11 // pred_fallthru
          _
        // Predicated region
        $region25: #{tpu_custom_call.1} parent=11 // pred_check
          %p287 = pneg %p133
        $region26: #{tpu_custom_call.1} parent=11 // pred_check_branch
          %289 = sbr.rel (%p287) target = $region28
        $region27: #{tpu_custom_call.1} parent=11 // pred_region
          _
        $region28: #{tpu_custom_call.1} parent=11 // pred_fallthru
          _
        // Predicated region
        $region29: #{tpu_custom_call.1} parent=11 // pred_check
          %p290 = pneg %p154
        $region30: #{tpu_custom_call.1} parent=11 // pred_check_branch
          %292 = sbr.rel (%p290) target = $region32
        $region31: #{tpu_custom_call.1} parent=11 // pred_region
          %s294 = ssub.s32 2048, 2048
          %295 = vsyncadd [#allocation9], %s294
          %s296 = sshll.u32 [#allocation8], 4
          %s297 = int_to_ptr.vmem [resolvable:$true] %s296
          %302 = dma.hbm_to_vmem [thread:$0]  %s5, 2048, %s297, [#allocation9], 64, 64, 4
        $region32: #{tpu_custom_call.1} parent=11 // pred_fallthru
          _
        // Predicated region
        $region33: #{tpu_custom_call.1} parent=11 // pred_check
          %p303 = pneg %p175
        $region34: #{tpu_custom_call.1} parent=11 // pred_check_branch
          %305 = sbr.rel (%p303) target = $region36
        $region35: #{tpu_custom_call.1} parent=11 // pred_region
          _
        $region36: #{tpu_custom_call.1} parent=11 // pred_fallthru
          _
        // Predicated region
        $region37: #{tpu_custom_call.1} parent=11 // pred_check
          %p306 = pneg %p196
        $region38: #{tpu_custom_call.1} parent=11 // pred_check_branch
          %308 = sbr.rel (%p306) target = $region40
        $region39: #{tpu_custom_call.1} parent=11 // pred_region
          %s310 = ssub.s32 1024, 1024
          %311 = vsyncadd [#allocation9], %s310
          %s312 = sshll.u32 [#allocation10], 4
          %s313 = int_to_ptr.vmem [resolvable:$true] %s312
          %318 = dma.hbm_to_vmem [thread:$0]  %s7, 1024, %s313, [#allocation9], 64, 64, 4
        $region40: #{tpu_custom_call.1} parent=11 // pred_fallthru
          _
        // Predicated region
        $region41: #{tpu_custom_call.1} parent=11 // pred_check
          %p319 = pneg %p217
        $region42: #{tpu_custom_call.1} parent=11 // pred_check_branch
          %321 = sbr.rel (%p319) target = $region44
        $region43: #{tpu_custom_call.1} parent=11 // pred_region
          _
        $region44: #{tpu_custom_call.1} parent=11 // pred_fallthru
          _
      $region12: #{tpu_custom_call.1} parent=5 // pred_fallthru
        _
      %p322 = scmp.lt.s32.totalorder %s23, 2
      // Predicated region
      $region45: #{tpu_custom_call.1} parent=5 // pred_check
        %p323 = pneg %p322
      $region46: #{tpu_custom_call.1} parent=5 // pred_check_branch
        %325 = sbr.rel (%p323) target = $region48
      $region47: #{tpu_custom_call.1} parent=5 // pred_region
        // Predicated region
        $region49: #{tpu_custom_call.1} parent=47 // pred_check
          %p326 = pneg %p43
        $region50: #{tpu_custom_call.1} parent=47 // pred_check_branch
          %328 = sbr.rel (%p326) target = $region52
        $region51: #{tpu_custom_call.1} parent=47 // pred_region
          %s329 = sand.u32 %s33, 1
          %s330 = scalar_lea.sflag [#allocation3], %s329
          %s331 = sand.u32 %s33, 1
          %s332 = smul.addr %s331, 4
          %s333 = scalar_lea.vmem [#allocation2], %s332
          %s335 = ssub.s32 64, 64
          %336 = vsyncadd %s330, %s335
          %s337 = smul.addr %s23, 64
          %s338 = scalar_lea.hbm %s0, %s337
          %s340 = sshll.u32 %s333, 4
          %s341 = int_to_ptr.vmem [resolvable:$true] %s340
          %343 = dma.hbm_to_vmem [thread:$0]  %s338, 64, %s341, %s330
        $region52: #{tpu_custom_call.1} parent=47 // pred_fallthru
          _
      $region48: #{tpu_custom_call.1} parent=5 // pred_fallthru
        _
      %p344 = scmp.le.s32.totalorder 1, %s23
      %p345 = scmp.lt.s32.totalorder %s23, 3
      %p346 = pnand %p344, %p345
      %p347 = pneg %p346
      // Predicated region
      $region53: #{tpu_custom_call.1} parent=5 // pred_check
        _
      $region54: #{tpu_custom_call.1} parent=5 // pred_check_branch
        %349 = sbr.rel (%p346) target = $region56
      $region55: #{tpu_custom_call.1} parent=5 // pred_region
        %s350 = ssub.s32 %s23, 1
        %s351 = sand.u32 %s36, 1
        %s352 = scalar_lea.sflag [#allocation3], %s351
        %s353 = sand.u32 %s36, 1
        %s354 = smul.addr %s353, 4
        %s355 = scalar_lea.vmem [#allocation2], %s354
        // Predicated region
        $region57: #{tpu_custom_call.1} parent=55 // pred_check
          %p356 = pneg %p49
        $region58: #{tpu_custom_call.1} parent=55 // pred_check_branch
          %358 = sbr.rel (%p356) target = $region60
        $region59: #{tpu_custom_call.1} parent=55 // pred_region
          %359 = dma.done %s352, 64
        $region60: #{tpu_custom_call.1} parent=55 // pred_fallthru
          _
        // Predicated region
        $region61: #{tpu_custom_call.1} parent=55 // pred_check
          %p360 = pneg %p70
        $region62: #{tpu_custom_call.1} parent=55 // pred_check_branch
          %362 = sbr.rel (%p360) target = $region64
        $region63: #{tpu_custom_call.1} parent=55 // pred_region
          %363 = dma.done [#allocation6], 5120
        $region64: #{tpu_custom_call.1} parent=55 // pred_fallthru
          _
        // Predicated region
        $region65: #{tpu_custom_call.1} parent=55 // pred_check
          %p364 = pneg %p112
        $region66: #{tpu_custom_call.1} parent=55 // pred_check_branch
          %366 = sbr.rel (%p364) target = $region68
        $region67: #{tpu_custom_call.1} parent=55 // pred_region
          %367 = dma.done [#allocation6], 8192
        $region68: #{tpu_custom_call.1} parent=55 // pred_fallthru
          _
        // Predicated region
        $region69: #{tpu_custom_call.1} parent=55 // pred_check
          %p368 = pneg %p154
        $region70: #{tpu_custom_call.1} parent=55 // pred_check_branch
          %370 = sbr.rel (%p368) target = $region72
        $region71: #{tpu_custom_call.1} parent=55 // pred_region
          %371 = dma.done [#allocation9], 2048
        $region72: #{tpu_custom_call.1} parent=55 // pred_fallthru
          _
        // Predicated region
        $region73: #{tpu_custom_call.1} parent=55 // pred_check
          %p372 = pneg %p196
        $region74: #{tpu_custom_call.1} parent=55 // pred_check_branch
          %374 = sbr.rel (%p372) target = $region76
        $region75: #{tpu_custom_call.1} parent=55 // pred_region
          %375 = dma.done [#allocation9], 1024
        $region76: #{tpu_custom_call.1} parent=55 // pred_fallthru
          _
        %s376 = sand.u32 %s36, 1
        %s377 = scalar_lea.sflag [#allocation3], %s376
        %s378 = sand.u32 %s36, 1
        %s379 = smul.addr %s378, 4
        %s380 = scalar_lea.vmem [#allocation2], %s379
        %p381 = pneg %p49
        %p382 = pneg %p46
        %p383 = pneg %p70
        %p384 = pneg %p67
        %p385 = pneg %p91
        %p386 = pneg %p88
        %p387 = pneg %p112
        %p388 = pneg %p109
        %p389 = pneg %p133
        %p390 = pneg %p130
        %p391 = pneg %p154
        %p392 = pneg %p151
        %p393 = pneg %p175
        %p394 = pneg %p172
        %p395 = pneg %p196
        %p396 = pneg %p193
        %p397 = pneg %p217
        %p398 = pneg %p214
        %p399 = pneg %p243
        %p400 = pneg %p240
        %s401 = sand.u32 %s230, 1
        %s402 = scalar_lea.sflag [#allocation4], %s401
        %s403 = sand.u32 %s230, 1
        %s404 = smul.addr %s403, 8
        %s405 = scalar_lea.vmem [#allocation11], %s404
        %v407 = vld [vmem:[%s355] sm:$0xf]
        %v408 = vld [vmem:[#allocation5] sm:$0xff]
        %v409 = vld [vmem:[#allocation5 + $0x8] sm:$0xff]
        %v410 = vld [vmem:[#allocation5 + $0x10] sm:$0xf]
        %v411 = vld [vmem:[#allocation5 + $0x14] sm:$0xff]
        %v412 = vld [vmem:[#allocation5 + $0x1c] sm:$0xff]
        %v413 = vld [vmem:[#allocation5 + $0x24] sm:$0xf]
        %v414 = vld [vmem:[#allocation5 + $0x28] sm:$0xff]
        %v415 = vld [vmem:[#allocation5 + $0x30] sm:$0xff]
        %v416 = vld [vmem:[#allocation5 + $0x38] sm:$0xf]
        %v417 = vld [vmem:[#allocation5 + $0x3c] sm:$0xff]
        %v418 = vld [vmem:[#allocation5 + $0x44] sm:$0xff]
        %v419 = vld [vmem:[#allocation5 + $0x4c] sm:$0xf]
        %v420 = vld [vmem:[#allocation5 + $0x50] sm:$0xff]
        %v421 = vld [vmem:[#allocation5 + $0x58] sm:$0xff]
        %v422 = vld [vmem:[#allocation5 + $0x60] sm:$0xf]
        %v423 = vld [vmem:[#allocation5 + $0x64] sm:$0xff]
        %v424 = vld [vmem:[#allocation5 + $0x6c] sm:$0xff]
        %v425 = vld [vmem:[#allocation5 + $0x74] sm:$0xf]
        %v426 = vld [vmem:[#allocation5 + $0x78] sm:$0xff]
        %v427 = vld [vmem:[#allocation5 + $0x80] sm:$0xff]
        %v428 = vld [vmem:[#allocation5 + $0x88] sm:$0xf]
        %v429 = vld [vmem:[#allocation5 + $0x8c] sm:$0xff]
        %v430 = vld [vmem:[#allocation5 + $0x94] sm:$0xff]
        %v431 = vld [vmem:[#allocation5 + $0x9c] sm:$0xf]
        %v432 = vld [vmem:[#allocation5 + $0xa0] sm:$0xff]
        %v433 = vld [vmem:[#allocation5 + $0xa8] sm:$0xff]
        %v434 = vld [vmem:[#allocation5 + $0xb0] sm:$0xf]
        %v435 = vld [vmem:[#allocation5 + $0xb4] sm:$0xff]
        %v436 = vld [vmem:[#allocation5 + $0xbc] sm:$0xff]
        %v437 = vld [vmem:[#allocation5 + $0xc4] sm:$0xf]
        %v438 = vld [vmem:[#allocation5 + $0xc8] sm:$0xff]
        %v439 = vld [vmem:[#allocation5 + $0xd0] sm:$0xff]
        %v440 = vld [vmem:[#allocation5 + $0xd8] sm:$0xf]
        %v441 = vld [vmem:[#allocation5 + $0xdc] sm:$0xff]
        %v442 = vld [vmem:[#allocation5 + $0xe4] sm:$0xff]
        %v443 = vld [vmem:[#allocation5 + $0xec] sm:$0xf]
        %v444 = vld [vmem:[#allocation5 + $0xf0] sm:$0xff]
        %v445 = vld [vmem:[#allocation5 + $0xf8] sm:$0xff]
        %v446 = vld [vmem:[#allocation5 + $0x100] sm:$0xf]
        %v447 = vld [vmem:[#allocation5 + $0x104] sm:$0xff]
        %v448 = vld [vmem:[#allocation5 + $0x10c] sm:$0xff]
        %v449 = vld [vmem:[#allocation5 + $0x114] sm:$0xf]
        %v450 = vld [vmem:[#allocation5 + $0x118] sm:$0xff]
        %v451 = vld [vmem:[#allocation5 + $0x120] sm:$0xff]
        %v452 = vld [vmem:[#allocation5 + $0x128] sm:$0xf]
        %v453 = vld [vmem:[#allocation5 + $0x12c] sm:$0xff]
        %v454 = vld [vmem:[#allocation5 + $0x134] sm:$0xff]
        %v455 = vld [vmem:[#allocation5 + $0x13c] sm:$0xf]
        %v456 = vld [vmem:[%s2] sm:$0x1f]
        %v458 = vlaneseq
        %v459 = vshrl.u32 %v458, 7
        %v460 = vsub.s32 0, %v459
        %v461 = vrot.slane %v456, %v460
        %v462 = vlaneseq
        %v463 = vshrl.u32 %v462, 7
        %v464 = vsub.s32 1, %v463
        %v465 = vrot.slane %v456, %v464
        %v466 = vlaneseq
        %v467 = vshrl.u32 %v466, 7
        %v468 = vsub.s32 2, %v467
        %v469 = vrot.slane %v456, %v468
        %v470 = vlaneseq
        %v471 = vshrl.u32 %v470, 7
        %v472 = vsub.s32 3, %v471
        %v473 = vrot.slane %v456, %v472
        %v474 = vlaneseq
        %v475 = vshrl.u32 %v474, 7
        %v476 = vsub.s32 4, %v475
        %v477 = vrot.slane %v456, %v476
        %v531 = vunpack.c.l.b16 %v408
        %v532 = vunpack.c.h.b16 %v408
        %v533 = vunpack.c.l.b16 %v409
        %v534 = vunpack.c.h.b16 %v409
        %v535 = vunpack.c.l.b16 %v410
        %v536 = vunpack.c.l.b16 %v411
        %v537 = vunpack.c.h.b16 %v411
        %v538 = vunpack.c.l.b16 %v412
        %v539 = vunpack.c.h.b16 %v412
        %v540 = vunpack.c.l.b16 %v413
        %v541 = vunpack.c.l.b16 %v414
        %v542 = vunpack.c.h.b16 %v414
        %v543 = vunpack.c.l.b16 %v415
        %v544 = vunpack.c.h.b16 %v415
        %v545 = vunpack.c.l.b16 %v416
        %v546 = vunpack.c.l.b16 %v417
        %v547 = vunpack.c.h.b16 %v417
        %v548 = vunpack.c.l.b16 %v418
        %v549 = vunpack.c.h.b16 %v418
        %v550 = vunpack.c.l.b16 %v419
        %v551 = vunpack.c.l.b16 %v420
        %v552 = vunpack.c.h.b16 %v420
        %v553 = vunpack.c.l.b16 %v421
        %v554 = vunpack.c.h.b16 %v421
        %v555 = vunpack.c.l.b16 %v422
        %v556 = vunpack.c.l.b16 %v423
        %v557 = vunpack.c.h.b16 %v423
        %v558 = vunpack.c.l.b16 %v424
        %v559 = vunpack.c.h.b16 %v424
        %v560 = vunpack.c.l.b16 %v425
        %v561 = vunpack.c.l.b16 %v426
        %v562 = vunpack.c.h.b16 %v426
        %v563 = vunpack.c.l.b16 %v427
        %v564 = vunpack.c.h.b16 %v427
        %v565 = vunpack.c.l.b16 %v428
        %v566 = vunpack.c.l.b16 %v429
        %v567 = vunpack.c.h.b16 %v429
        %v568 = vunpack.c.l.b16 %v430
        %v569 = vunpack.c.h.b16 %v430
        %v570 = vunpack.c.l.b16 %v431
        %v571 = vunpack.c.l.b16 %v432
        %v572 = vunpack.c.h.b16 %v432
        %v573 = vunpack.c.l.b16 %v433
        %v574 = vunpack.c.h.b16 %v433
        %v575 = vunpack.c.l.b16 %v434
        %v576 = vunpack.c.l.b16 %v435
        %v577 = vunpack.c.h.b16 %v435
        %v578 = vunpack.c.l.b16 %v436
        %v579 = vunpack.c.h.b16 %v436
        %v580 = vunpack.c.l.b16 %v437
        %v581 = vunpack.c.l.b16 %v438
        %v582 = vunpack.c.h.b16 %v438
        %v583 = vunpack.c.l.b16 %v439
        %v584 = vunpack.c.h.b16 %v439
        %v585 = vunpack.c.l.b16 %v440
        %v586 = vunpack.c.l.b16 %v441
        %v587 = vunpack.c.h.b16 %v441
        %v588 = vunpack.c.l.b16 %v442
        %v589 = vunpack.c.h.b16 %v442
        %v590 = vunpack.c.l.b16 %v443
        %v591 = vunpack.c.l.b16 %v444
        %v592 = vunpack.c.h.b16 %v444
        %v593 = vunpack.c.l.b16 %v445
        %v594 = vunpack.c.h.b16 %v445
        %v595 = vunpack.c.l.b16 %v446
        %v596 = vunpack.c.l.b16 %v447
        %v597 = vunpack.c.h.b16 %v447
        %v598 = vunpack.c.l.b16 %v448
        %v599 = vunpack.c.h.b16 %v448
        %v600 = vunpack.c.l.b16 %v449
        %v601 = vunpack.c.l.b16 %v450
        %v602 = vunpack.c.h.b16 %v450
        %v603 = vunpack.c.l.b16 %v451
        %v604 = vunpack.c.h.b16 %v451
        %v605 = vunpack.c.l.b16 %v452
        %v606 = vunpack.c.l.b16 %v453
        %v607 = vunpack.c.h.b16 %v453
        %v608 = vunpack.c.l.b16 %v454
        %v609 = vunpack.c.h.b16 %v454
        %v610 = vunpack.c.l.b16 %v455
        %v611 = vpack.c.b16 %v536, %v531
        %v612 = vpack.c.b16 %v537, %v532
        %v613 = vpack.c.b16 %v538, %v533
        %v614 = vpack.c.b16 %v539, %v534
        %v615 = vpack.c.b16 %v540, %v535
        %v616 = vpack.c.b16 %v546, %v541
        %v617 = vpack.c.b16 %v547, %v542
        %v618 = vpack.c.b16 %v548, %v543
        %v619 = vpack.c.b16 %v549, %v544
        %v620 = vpack.c.b16 %v550, %v545
        %v621 = vpack.c.b16 %v556, %v551
        %v622 = vpack.c.b16 %v557, %v552
        %v623 = vpack.c.b16 %v558, %v553
        %v624 = vpack.c.b16 %v559, %v554
        %v625 = vpack.c.b16 %v560, %v555
        %v626 = vpack.c.b16 %v566, %v561
        %v627 = vpack.c.b16 %v567, %v562
        %v628 = vpack.c.b16 %v568, %v563
        %v629 = vpack.c.b16 %v569, %v564
        %v630 = vpack.c.b16 %v570, %v565
        %v631 = vpack.c.b16 %v576, %v571
        %v632 = vpack.c.b16 %v577, %v572
        %v633 = vpack.c.b16 %v578, %v573
        %v634 = vpack.c.b16 %v579, %v574
        %v635 = vpack.c.b16 %v580, %v575
        %v636 = vpack.c.b16 %v586, %v581
        %v637 = vpack.c.b16 %v587, %v582
        %v638 = vpack.c.b16 %v588, %v583
        %v639 = vpack.c.b16 %v589, %v584
        %v640 = vpack.c.b16 %v590, %v585
        %v641 = vpack.c.b16 %v596, %v591
        %v642 = vpack.c.b16 %v597, %v592
        %v643 = vpack.c.b16 %v598, %v593
        %v644 = vpack.c.b16 %v599, %v594
        %v645 = vpack.c.b16 %v600, %v595
        %v646 = vpack.c.b16 %v606, %v601
        %v647 = vpack.c.b16 %v607, %v602
        %v648 = vpack.c.b16 %v608, %v603
        %v649 = vpack.c.b16 %v609, %v604
        %v650 = vpack.c.b16 %v610, %v605
        %691 = vmatprep.subr.bf16.mxu0 %v612
        %692 = vmatpush1.bf16.msra.mxu0 %v611
        %693 = vmatprep.subr.bf16.mxu0 %v617
        %694 = vmatpush1.bf16.msra.mxu0 %v616
        %695 = vmatprep.subr.bf16.mxu0 %v622
        %696 = vmatpush1.bf16.msra.mxu0 %v621
        %697 = vmatprep.subr.bf16.mxu0 %v627
        %698 = vmatpush1.bf16.msra.mxu0 %v626
        %699 = vmatprep.subr.bf16.mxu0 %v632
        %700 = vmatpush1.bf16.msra.mxu0 %v631
        %701 = vmatprep.subr.bf16.mxu0 %v637
        %702 = vmatpush1.bf16.msra.mxu0 %v636
        %703 = vmatprep.subr.bf16.mxu0 %v642
        %704 = vmatpush1.bf16.msra.mxu0 %v641
        %705 = vmatprep.subr.bf16.mxu0 %v647
        %706 = vmatpush1.bf16.msra.mxu0 %v646
        %707 = vmatprep.subr.bf16.mxu0 0
        %708 = vmatpush1.bf16.msra.mxu0 0
        %709 = vmatprep.subr.bf16.mxu0 0
        %710 = vmatpush1.bf16.msra.mxu0 0
        %711 = vmatprep.subr.bf16.mxu0 0
        %712 = vmatpush1.bf16.msra.mxu0 0
        %713 = vmatprep.subr.bf16.mxu0 0
        %714 = vmatpush1.bf16.msra.mxu0 0
        %715 = vmatprep.subr.bf16.mxu0 0
        %716 = vmatpush1.bf16.msra.mxu0 0
        %717 = vmatprep.subr.bf16.mxu0 0
        %718 = vmatpush1.bf16.msra.mxu0 0
        %719 = vmatprep.subr.bf16.mxu0 0
        %720 = vmatpush1.bf16.msra.mxu0 0
        %721 = vmatprep.subr.bf16.mxu0 0
        %722 = vmatpush1.bf16.msra.mxu0 0
        %723 = vmatprep.mubr.bf16.mxu0 0
        %724 = vmatmul.mubr.bf16.gmra.mrb[0].mxu0 %v407
        %v725 = vpop.f32.mrb[0].mxu0
        %v726 = vadd.f32 %v461, %v725
        %v727 = vpop.f32.mrb[0].mxu0
        %v728 = vadd.f32 %v465, %v727
        %v729 = vpop.f32.mrb[0].mxu0
        %v730 = vpop.f32.mrb[0].mxu0
        %731 = vdwg.mxu0
        %732 = vmatprep.subr.bf16.mxu0 %v614
        %733 = vmatpush1.bf16.msra.mxu0 %v613
        %734 = vmatprep.subr.bf16.mxu0 %v619
        %735 = vmatpush1.bf16.msra.mxu0 %v618
        %736 = vmatprep.subr.bf16.mxu0 %v624
        %737 = vmatpush1.bf16.msra.mxu0 %v623
        %738 = vmatprep.subr.bf16.mxu0 %v629
        %739 = vmatpush1.bf16.msra.mxu0 %v628
        %740 = vmatprep.subr.bf16.mxu0 %v634
        %741 = vmatpush1.bf16.msra.mxu0 %v633
        %742 = vmatprep.subr.bf16.mxu0 %v639
        %743 = vmatpush1.bf16.msra.mxu0 %v638
        %744 = vmatprep.subr.bf16.mxu0 %v644
        %745 = vmatpush1.bf16.msra.mxu0 %v643
        %746 = vmatprep.subr.bf16.mxu0 %v649
        %747 = vmatpush1.bf16.msra.mxu0 %v648
        %748 = vmatprep.subr.bf16.mxu0 0
        %749 = vmatpush1.bf16.msra.mxu0 0
        %750 = vmatprep.subr.bf16.mxu0 0
        %751 = vmatpush1.bf16.msra.mxu0 0
        %752 = vmatprep.subr.bf16.mxu0 0
        %753 = vmatpush1.bf16.msra.mxu0 0
        %754 = vmatprep.subr.bf16.mxu0 0
        %755 = vmatpush1.bf16.msra.mxu0 0
        %756 = vmatprep.subr.bf16.mxu0 0
        %757 = vmatpush1.bf16.msra.mxu0 0
        %758 = vmatprep.subr.bf16.mxu0 0
        %759 = vmatpush1.bf16.msra.mxu0 0
        %760 = vmatprep.subr.bf16.mxu0 0
        %761 = vmatpush1.bf16.msra.mxu0 0
        %762 = vmatprep.subr.bf16.mxu0 0
        %763 = vmatpush1.bf16.msra.mxu0 0
        %764 = vmatprep.mubr.bf16.mxu0 0
        %765 = vmatmul.mubr.bf16.gmra.mrb[0].mxu0 %v407
        %v766 = vpop.f32.mrb[0].mxu0
        %v767 = vadd.f32 %v469, %v766
        %v768 = vpop.f32.mrb[0].mxu0
        %v769 = vadd.f32 %v473, %v768
        %v770 = vpop.f32.mrb[0].mxu0
        %v771 = vpop.f32.mrb[0].mxu0
        %772 = vdwg.mxu0
        %773 = vmatprep.subr.bf16.mxu0 0
        %774 = vmatpush1.bf16.msra.mxu0 %v615
        %775 = vmatprep.subr.bf16.mxu0 0
        %776 = vmatpush1.bf16.msra.mxu0 %v620
        %777 = vmatprep.subr.bf16.mxu0 0
        %778 = vmatpush1.bf16.msra.mxu0 %v625
        %779 = vmatprep.subr.bf16.mxu0 0
        %780 = vmatpush1.bf16.msra.mxu0 %v630
        %781 = vmatprep.subr.bf16.mxu0 0
        %782 = vmatpush1.bf16.msra.mxu0 %v635
        %783 = vmatprep.subr.bf16.mxu0 0
        %784 = vmatpush1.bf16.msra.mxu0 %v640
        %785 = vmatprep.subr.bf16.mxu0 0
        %786 = vmatpush1.bf16.msra.mxu0 %v645
        %787 = vmatprep.subr.bf16.mxu0 0
        %788 = vmatpush1.bf16.msra.mxu0 %v650
        %789 = vmatprep.subr.bf16.mxu0 0
        %790 = vmatpush1.bf16.msra.mxu0 0
        %791 = vmatprep.subr.bf16.mxu0 0
        %792 = vmatpush1.bf16.msra.mxu0 0
        %793 = vmatprep.subr.bf16.mxu0 0
        %794 = vmatpush1.bf16.msra.mxu0 0
        %795 = vmatprep.subr.bf16.mxu0 0
        %796 = vmatpush1.bf16.msra.mxu0 0
        %797 = vmatprep.subr.bf16.mxu0 0
        %798 = vmatpush1.bf16.msra.mxu0 0
        %799 = vmatprep.subr.bf16.mxu0 0
        %800 = vmatpush1.bf16.msra.mxu0 0
        %801 = vmatprep.subr.bf16.mxu0 0
        %802 = vmatpush1.bf16.msra.mxu0 0
        %803 = vmatprep.subr.bf16.mxu0 0
        %804 = vmatpush1.bf16.msra.mxu0 0
        %805 = vmatprep.mubr.bf16.mxu0 0
        %806 = vmatmul.mubr.bf16.gmra.mrb[0].mxu0 %v407
        %v807 = vpop.f32.mrb[0].mxu0
        %v808 = vadd.f32 %v477, %v807
        %v809 = vpop.f32.mrb[0].mxu0
        %v810 = vpop.f32.mrb[0].mxu0
        %v811 = vpop.f32.mrb[0].mxu0
        %812 = vdwg.mxu0
        %v813 = vmax.f32 %v726, 0.0
        %v814 = vmax.f32 %v728, 0.0
        %v815 = vmax.f32 %v767, 0.0
        %v816 = vmax.f32 %v769, 0.0
        %v817 = vpack.c.bf16 %v813, %v813
        %v818 = vpack.c.bf16 %v814, %v814
        %v819 = vpack.c.bf16 %v815, %v815
        %v820 = vpack.c.bf16 %v816, %v816
        %v821 = vld [vmem:[#allocation7] sm:$0xff]
        %v822 = vld [vmem:[#allocation7 + $0x8] sm:$0xff]
        %v823 = vld [vmem:[#allocation7 + $0x10] sm:$0xff]
        %v824 = vld [vmem:[#allocation7 + $0x18] sm:$0xff]
        %v825 = vld [vmem:[#allocation7 + $0x20] sm:$0xff]
        %v826 = vld [vmem:[#allocation7 + $0x28] sm:$0xff]
        %v827 = vld [vmem:[#allocation7 + $0x30] sm:$0xff]
        %v828 = vld [vmem:[#allocation7 + $0x38] sm:$0xff]
        %v829 = vld [vmem:[#allocation7 + $0x40] sm:$0xff]
        %v830 = vld [vmem:[#allocation7 + $0x48] sm:$0xff]
        %v831 = vld [vmem:[#allocation7 + $0x50] sm:$0xff]
        %v832 = vld [vmem:[#allocation7 + $0x58] sm:$0xff]
        %v833 = vld [vmem:[#allocation7 + $0x60] sm:$0xff]
        %v834 = vld [vmem:[#allocation7 + $0x68] sm:$0xff]
        %v835 = vld [vmem:[#allocation7 + $0x70] sm:$0xff]
        %v836 = vld [vmem:[#allocation7 + $0x78] sm:$0xff]
        %v837 = vld [vmem:[#allocation7 + $0x80] sm:$0xff]
        %v838 = vld [vmem:[#allocation7 + $0x88] sm:$0xff]
        %v839 = vld [vmem:[#allocation7 + $0x90] sm:$0xff]
        %v840 = vld [vmem:[#allocation7 + $0x98] sm:$0xff]
        %v841 = vld [vmem:[#allocation7 + $0xa0] sm:$0xff]
        %v842 = vld [vmem:[#allocation7 + $0xa8] sm:$0xff]
        %v843 = vld [vmem:[#allocation7 + $0xb0] sm:$0xff]
        %v844 = vld [vmem:[#allocation7 + $0xb8] sm:$0xff]
        %v845 = vld [vmem:[#allocation7 + $0xc0] sm:$0xff]
        %v846 = vld [vmem:[#allocation7 + $0xc8] sm:$0xff]
        %v847 = vld [vmem:[#allocation7 + $0xd0] sm:$0xff]
        %v848 = vld [vmem:[#allocation7 + $0xd8] sm:$0xff]
        %v849 = vld [vmem:[#allocation7 + $0xe0] sm:$0xff]
        %v850 = vld [vmem:[#allocation7 + $0xe8] sm:$0xff]
        %v851 = vld [vmem:[#allocation7 + $0xf0] sm:$0xff]
        %v852 = vld [vmem:[#allocation7 + $0xf8] sm:$0xff]
        %v853 = vld [vmem:[#allocation7 + $0x100] sm:$0xff]
        %v854 = vld [vmem:[#allocation7 + $0x108] sm:$0xff]
        %v855 = vld [vmem:[#allocation7 + $0x110] sm:$0xff]
        %v856 = vld [vmem:[#allocation7 + $0x118] sm:$0xff]
        %v857 = vld [vmem:[#allocation7 + $0x120] sm:$0xff]
        %v858 = vld [vmem:[#allocation7 + $0x128] sm:$0xff]
        %v859 = vld [vmem:[#allocation7 + $0x130] sm:$0xff]
        %v860 = vld [vmem:[#allocation7 + $0x138] sm:$0xff]
        %v861 = vld [vmem:[#allocation7 + $0x140] sm:$0xff]
        %v862 = vld [vmem:[#allocation7 + $0x148] sm:$0xff]
        %v863 = vld [vmem:[#allocation7 + $0x150] sm:$0xff]
        %v864 = vld [vmem:[#allocation7 + $0x158] sm:$0xff]
        %v865 = vld [vmem:[#allocation7 + $0x160] sm:$0xff]
        %v866 = vld [vmem:[#allocation7 + $0x168] sm:$0xff]
        %v867 = vld [vmem:[#allocation7 + $0x170] sm:$0xff]
        %v868 = vld [vmem:[#allocation7 + $0x178] sm:$0xff]
        %v869 = vld [vmem:[#allocation7 + $0x180] sm:$0xff]
        %v870 = vld [vmem:[#allocation7 + $0x188] sm:$0xff]
        %v871 = vld [vmem:[#allocation7 + $0x190] sm:$0xff]
        %v872 = vld [vmem:[#allocation7 + $0x198] sm:$0xff]
        %v873 = vld [vmem:[#allocation7 + $0x1a0] sm:$0xff]
        %v874 = vld [vmem:[#allocation7 + $0x1a8] sm:$0xff]
        %v875 = vld [vmem:[#allocation7 + $0x1b0] sm:$0xff]
        %v876 = vld [vmem:[#allocation7 + $0x1b8] sm:$0xff]
        %v877 = vld [vmem:[#allocation7 + $0x1c0] sm:$0xff]
        %v878 = vld [vmem:[#allocation7 + $0x1c8] sm:$0xff]
        %v879 = vld [vmem:[#allocation7 + $0x1d0] sm:$0xff]
        %v880 = vld [vmem:[#allocation7 + $0x1d8] sm:$0xff]
        %v881 = vld [vmem:[#allocation7 + $0x1e0] sm:$0xff]
        %v882 = vld [vmem:[#allocation7 + $0x1e8] sm:$0xff]
        %v883 = vld [vmem:[#allocation7 + $0x1f0] sm:$0xff]
        %v884 = vld [vmem:[#allocation7 + $0x1f8] sm:$0xff]
        %v885 = vld [vmem:[%s4] sm:$0x3]
        %v887 = vlaneseq
        %v888 = vshrl.u32 %v887, 7
        %v889 = vsub.s32 0, %v888
        %v890 = vrot.slane %v885, %v889
        %v891 = vlaneseq
        %v892 = vshrl.u32 %v891, 7
        %v893 = vsub.s32 1, %v892
        %v894 = vrot.slane %v885, %v893
        %v961 = vunpack.c.l.b16 %v821
        %v962 = vunpack.c.h.b16 %v821
        %v963 = vunpack.c.l.b16 %v822
        %v964 = vunpack.c.h.b16 %v822
        %v965 = vunpack.c.l.b16 %v823
        %v966 = vunpack.c.h.b16 %v823
        %v967 = vunpack.c.l.b16 %v824
        %v968 = vunpack.c.h.b16 %v824
        %v969 = vunpack.c.l.b16 %v825
        %v970 = vunpack.c.h.b16 %v825
        %v971 = vunpack.c.l.b16 %v826
        %v972 = vunpack.c.h.b16 %v826
        %v973 = vunpack.c.l.b16 %v827
        %v974 = vunpack.c.h.b16 %v827
        %v975 = vunpack.c.l.b16 %v828
        %v976 = vunpack.c.h.b16 %v828
        %v977 = vunpack.c.l.b16 %v829
        %v978 = vunpack.c.h.b16 %v829
        %v979 = vunpack.c.l.b16 %v830
        %v980 = vunpack.c.h.b16 %v830
        %v981 = vunpack.c.l.b16 %v831
        %v982 = vunpack.c.h.b16 %v831
        %v983 = vunpack.c.l.b16 %v832
        %v984 = vunpack.c.h.b16 %v832
        %v985 = vunpack.c.l.b16 %v833
        %v986 = vunpack.c.h.b16 %v833
        %v987 = vunpack.c.l.b16 %v834
        %v988 = vunpack.c.h.b16 %v834
        %v989 = vunpack.c.l.b16 %v835
        %v990 = vunpack.c.h.b16 %v835
        %v991 = vunpack.c.l.b16 %v836
        %v992 = vunpack.c.h.b16 %v836
        %v993 = vunpack.c.l.b16 %v837
        %v994 = vunpack.c.h.b16 %v837
        %v995 = vunpack.c.l.b16 %v838
        %v996 = vunpack.c.h.b16 %v838
        %v997 = vunpack.c.l.b16 %v839
        %v998 = vunpack.c.h.b16 %v839
        %v999 = vunpack.c.l.b16 %v840
        %v1000 = vunpack.c.h.b16 %v840
        %v1001 = vunpack.c.l.b16 %v841
        %v1002 = vunpack.c.h.b16 %v841
        %v1003 = vunpack.c.l.b16 %v842
        %v1004 = vunpack.c.h.b16 %v842
        %v1005 = vunpack.c.l.b16 %v843
        %v1006 = vunpack.c.h.b16 %v843
        %v1007 = vunpack.c.l.b16 %v844
        %v1008 = vunpack.c.h.b16 %v844
        %v1009 = vunpack.c.l.b16 %v845
        %v1010 = vunpack.c.h.b16 %v845
        %v1011 = vunpack.c.l.b16 %v846
        %v1012 = vunpack.c.h.b16 %v846
        %v1013 = vunpack.c.l.b16 %v847
        %v1014 = vunpack.c.h.b16 %v847
        %v1015 = vunpack.c.l.b16 %v848
        %v1016 = vunpack.c.h.b16 %v848
        %v1017 = vunpack.c.l.b16 %v849
        %v1018 = vunpack.c.h.b16 %v849
        %v1019 = vunpack.c.l.b16 %v850
        %v1020 = vunpack.c.h.b16 %v850
        %v1021 = vunpack.c.l.b16 %v851
        %v1022 = vunpack.c.h.b16 %v851
        %v1023 = vunpack.c.l.b16 %v852
        %v1024 = vunpack.c.h.b16 %v852
        %v1025 = vunpack.c.l.b16 %v853
        %v1026 = vunpack.c.h.b16 %v853
        %v1027 = vunpack.c.l.b16 %v854
        %v1028 = vunpack.c.h.b16 %v854
        %v1029 = vunpack.c.l.b16 %v855
        %v1030 = vunpack.c.h.b16 %v855
        %v1031 = vunpack.c.l.b16 %v856
        %v1032 = vunpack.c.h.b16 %v856
        %v1033 = vunpack.c.l.b16 %v857
        %v1034 = vunpack.c.h.b16 %v857
        %v1035 = vunpack.c.l.b16 %v858
        %v1036 = vunpack.c.h.b16 %v858
        %v1037 = vunpack.c.l.b16 %v859
        %v1038 = vunpack.c.h.b16 %v859
        %v1039 = vunpack.c.l.b16 %v860
        %v1040 = vunpack.c.h.b16 %v860
        %v1041 = vunpack.c.l.b16 %v861
        %v1042 = vunpack.c.h.b16 %v861
        %v1043 = vunpack.c.l.b16 %v862
        %v1044 = vunpack.c.h.b16 %v862
        %v1045 = vunpack.c.l.b16 %v863
        %v1046 = vunpack.c.h.b16 %v863
        %v1047 = vunpack.c.l.b16 %v864
        %v1048 = vunpack.c.h.b16 %v864
        %v1049 = vunpack.c.l.b16 %v865
        %v1050 = vunpack.c.h.b16 %v865
        %v1051 = vunpack.c.l.b16 %v866
        %v1052 = vunpack.c.h.b16 %v866
        %v1053 = vunpack.c.l.b16 %v867
        %v1054 = vunpack.c.h.b16 %v867
        %v1055 = vunpack.c.l.b16 %v868
        %v1056 = vunpack.c.h.b16 %v868
        %v1057 = vunpack.c.l.b16 %v869
        %v1058 = vunpack.c.h.b16 %v869
        %v1059 = vunpack.c.l.b16 %v870
        %v1060 = vunpack.c.h.b16 %v870
        %v1061 = vunpack.c.l.b16 %v871
        %v1062 = vunpack.c.h.b16 %v871
        %v1063 = vunpack.c.l.b16 %v872
        %v1064 = vunpack.c.h.b16 %v872
        %v1065 = vunpack.c.l.b16 %v873
        %v1066 = vunpack.c.h.b16 %v873
        %v1067 = vunpack.c.l.b16 %v874
        %v1068 = vunpack.c.h.b16 %v874
        %v1069 = vunpack.c.l.b16 %v875
        %v1070 = vunpack.c.h.b16 %v875
        %v1071 = vunpack.c.l.b16 %v876
        %v1072 = vunpack.c.h.b16 %v876
        %v1073 = vunpack.c.l.b16 %v877
        %v1074 = vunpack.c.h.b16 %v877
        %v1075 = vunpack.c.l.b16 %v878
        %v1076 = vunpack.c.h.b16 %v878
        %v1077 = vunpack.c.l.b16 %v879
        %v1078 = vunpack.c.h.b16 %v879
        %v1079 = vunpack.c.l.b16 %v880
        %v1080 = vunpack.c.h.b16 %v880
        %v1081 = vunpack.c.l.b16 %v881
        %v1082 = vunpack.c.h.b16 %v881
        %v1083 = vunpack.c.l.b16 %v882
        %v1084 = vunpack.c.h.b16 %v882
        %v1085 = vunpack.c.l.b16 %v883
        %v1086 = vunpack.c.h.b16 %v883
        %v1087 = vunpack.c.l.b16 %v884
        %v1088 = vunpack.c.h.b16 %v884
        %v1089 = vpack.c.b16 %v963, %v961
        %v1090 = vpack.c.b16 %v964, %v962
        %v1091 = vpack.c.b16 %v967, %v965
        %v1092 = vpack.c.b16 %v968, %v966
        %v1093 = vpack.c.b16 %v971, %v969
        %v1094 = vpack.c.b16 %v972, %v970
        %v1095 = vpack.c.b16 %v975, %v973
        %v1096 = vpack.c.b16 %v976, %v974
        %v1097 = vpack.c.b16 %v979, %v977
        %v1098 = vpack.c.b16 %v980, %v978
        %v1099 = vpack.c.b16 %v983, %v981
        %v1100 = vpack.c.b16 %v984, %v982
        %v1101 = vpack.c.b16 %v987, %v985
        %v1102 = vpack.c.b16 %v988, %v986
        %v1103 = vpack.c.b16 %v991, %v989
        %v1104 = vpack.c.b16 %v992, %v990
        %v1105 = vpack.c.b16 %v995, %v993
        %v1106 = vpack.c.b16 %v996, %v994
        %v1107 = vpack.c.b16 %v999, %v997
        %v1108 = vpack.c.b16 %v1000, %v998
        %v1109 = vpack.c.b16 %v1003, %v1001
        %v1110 = vpack.c.b16 %v1004, %v1002
        %v1111 = vpack.c.b16 %v1007, %v1005
        %v1112 = vpack.c.b16 %v1008, %v1006
        %v1113 = vpack.c.b16 %v1011, %v1009
        %v1114 = vpack.c.b16 %v1012, %v1010
        %v1115 = vpack.c.b16 %v1015, %v1013
        %v1116 = vpack.c.b16 %v1016, %v1014
        %v1117 = vpack.c.b16 %v1019, %v1017
        %v1118 = vpack.c.b16 %v1020, %v1018
        %v1119 = vpack.c.b16 %v1023, %v1021
        %v1120 = vpack.c.b16 %v1024, %v1022
        %v1121 = vpack.c.b16 %v1027, %v1025
        %v1122 = vpack.c.b16 %v1028, %v1026
        %v1123 = vpack.c.b16 %v1031, %v1029
        %v1124 = vpack.c.b16 %v1032, %v1030
        %v1125 = vpack.c.b16 %v1035, %v1033
        %v1126 = vpack.c.b16 %v1036, %v1034
        %v1127 = vpack.c.b16 %v1039, %v1037
        %v1128 = vpack.c.b16 %v1040, %v1038
        %v1129 = vpack.c.b16 %v1043, %v1041
        %v1130 = vpack.c.b16 %v1044, %v1042
        %v1131 = vpack.c.b16 %v1047, %v1045
        %v1132 = vpack.c.b16 %v1048, %v1046
        %v1133 = vpack.c.b16 %v1051, %v1049
        %v1134 = vpack.c.b16 %v1052, %v1050
        %v1135 = vpack.c.b16 %v1055, %v1053
        %v1136 = vpack.c.b16 %v1056, %v1054
        %v1137 = vpack.c.b16 %v1059, %v1057
        %v1138 = vpack.c.b16 %v1060, %v1058
        %v1139 = vpack.c.b16 %v1063, %v1061
        %v1140 = vpack.c.b16 %v1064, %v1062
        %v1141 = vpack.c.b16 %v1067, %v1065
        %v1142 = vpack.c.b16 %v1068, %v1066
        %v1143 = vpack.c.b16 %v1071, %v1069
        %v1144 = vpack.c.b16 %v1072, %v1070
        %v1145 = vpack.c.b16 %v1075, %v1073
        %v1146 = vpack.c.b16 %v1076, %v1074
        %v1147 = vpack.c.b16 %v1079, %v1077
        %v1148 = vpack.c.b16 %v1080, %v1078
        %v1149 = vpack.c.b16 %v1083, %v1081
        %v1150 = vpack.c.b16 %v1084, %v1082
        %v1151 = vpack.c.b16 %v1087, %v1085
        %v1152 = vpack.c.b16 %v1088, %v1086
        %1217 = vmatprep.subr.bf16.mxu0 %v1090
        %1218 = vmatpush1.bf16.msra.mxu0 %v1089
        %1219 = vmatprep.subr.bf16.mxu0 %v1092
        %1220 = vmatpush1.bf16.msra.mxu0 %v1091
        %1221 = vmatprep.subr.bf16.mxu0 %v1094
        %1222 = vmatpush1.bf16.msra.mxu0 %v1093
        %1223 = vmatprep.subr.bf16.mxu0 %v1096
        %1224 = vmatpush1.bf16.msra.mxu0 %v1095
        %1225 = vmatprep.subr.bf16.mxu0 %v1098
        %1226 = vmatpush1.bf16.msra.mxu0 %v1097
        %1227 = vmatprep.subr.bf16.mxu0 %v1100
        %1228 = vmatpush1.bf16.msra.mxu0 %v1099
        %1229 = vmatprep.subr.bf16.mxu0 %v1102
        %1230 = vmatpush1.bf16.msra.mxu0 %v1101
        %1231 = vmatprep.subr.bf16.mxu0 %v1104
        %1232 = vmatpush1.bf16.msra.mxu0 %v1103
        %1233 = vmatprep.subr.bf16.mxu0 %v1106
        %1234 = vmatpush1.bf16.msra.mxu0 %v1105
        %1235 = vmatprep.subr.bf16.mxu0 %v1108
        %1236 = vmatpush1.bf16.msra.mxu0 %v1107
        %1237 = vmatprep.subr.bf16.mxu0 %v1110
        %1238 = vmatpush1.bf16.msra.mxu0 %v1109
        %1239 = vmatprep.subr.bf16.mxu0 %v1112
        %1240 = vmatpush1.bf16.msra.mxu0 %v1111
        %1241 = vmatprep.subr.bf16.mxu0 %v1114
        %1242 = vmatpush1.bf16.msra.mxu0 %v1113
        %1243 = vmatprep.subr.bf16.mxu0 %v1116
        %1244 = vmatpush1.bf16.msra.mxu0 %v1115
        %1245 = vmatprep.subr.bf16.mxu0 %v1118
        %1246 = vmatpush1.bf16.msra.mxu0 %v1117
        %1247 = vmatprep.subr.bf16.mxu0 %v1120
        %1248 = vmatpush1.bf16.msra.mxu0 %v1119
        %1249 = vmatprep.mubr.bf16.mxu0 %v818
        %1250 = vmatmul.mubr.bf16.gmra.mrb[0].mxu0 %v817
        %v1251 = vpop.f32.mrb[0].mxu0
        %v1252 = vadd.f32 %v890, %v1251
        %v1253 = vpop.f32.mrb[0].mxu0
        %v1254 = vadd.f32 %v894, %v1253
        %v1255 = vpop.f32.mrb[0].mxu0
        %v1256 = vpop.f32.mrb[0].mxu0
        %1257 = vdwg.mxu0
        %1258 = vmatprep.subr.bf16.mxu0 %v1122
        %1259 = vmatpush1.bf16.msra.mxu0 %v1121
        %1260 = vmatprep.subr.bf16.mxu0 %v1124
        %1261 = vmatpush1.bf16.msra.mxu0 %v1123
        %1262 = vmatprep.subr.bf16.mxu0 %v1126
        %1263 = vmatpush1.bf16.msra.mxu0 %v1125
        %1264 = vmatprep.subr.bf16.mxu0 %v1128
        %1265 = vmatpush1.bf16.msra.mxu0 %v1127
        %1266 = vmatprep.subr.bf16.mxu0 %v1130
        %1267 = vmatpush1.bf16.msra.mxu0 %v1129
        %1268 = vmatprep.subr.bf16.mxu0 %v1132
        %1269 = vmatpush1.bf16.msra.mxu0 %v1131
        %1270 = vmatprep.subr.bf16.mxu0 %v1134
        %1271 = vmatpush1.bf16.msra.mxu0 %v1133
        %1272 = vmatprep.subr.bf16.mxu0 %v1136
        %1273 = vmatpush1.bf16.msra.mxu0 %v1135
        %1274 = vmatprep.subr.bf16.mxu0 %v1138
        %1275 = vmatpush1.bf16.msra.mxu0 %v1137
        %1276 = vmatprep.subr.bf16.mxu0 %v1140
        %1277 = vmatpush1.bf16.msra.mxu0 %v1139
        %1278 = vmatprep.subr.bf16.mxu0 %v1142
        %1279 = vmatpush1.bf16.msra.mxu0 %v1141
        %1280 = vmatprep.subr.bf16.mxu0 %v1144
        %1281 = vmatpush1.bf16.msra.mxu0 %v1143
        %1282 = vmatprep.subr.bf16.mxu0 %v1146
        %1283 = vmatpush1.bf16.msra.mxu0 %v1145
        %1284 = vmatprep.subr.bf16.mxu0 %v1148
        %1285 = vmatpush1.bf16.msra.mxu0 %v1147
        %1286 = vmatprep.subr.bf16.mxu0 %v1150
        %1287 = vmatpush1.bf16.msra.mxu0 %v1149
        %1288 = vmatprep.subr.bf16.mxu0 %v1152
        %1289 = vmatpush1.bf16.msra.mxu0 %v1151
        %1290 = vmatprep.mubr.bf16.mxu0 %v820
        %1291 = vmatmul.mubr.bf16.gmra.mrb[0].mxu0 %v819
        %v1292 = vpop.f32.mrb[0].mxu0
        %v1293 = vadd.f32 %v1252, %v1292
        %v1294 = vpop.f32.mrb[0].mxu0
        %v1295 = vadd.f32 %v1254, %v1294
        %v1296 = vpop.f32.mrb[0].mxu0
        %v1297 = vpop.f32.mrb[0].mxu0
        %1298 = vdwg.mxu0
        %v1299 = vmax.f32 %v1293, 0.0
        %v1300 = vmax.f32 %v1295, 0.0
        %v1301 = vpack.c.bf16 %v1299, %v1299
        %v1302 = vpack.c.bf16 %v1300, %v1300
        %v1303 = vld [vmem:[#allocation8] sm:$0xf]
        %v1304 = vld [vmem:[#allocation8 + $0x4] sm:$0xf]
        %v1305 = vld [vmem:[#allocation8 + $0x8] sm:$0xf]
        %v1306 = vld [vmem:[#allocation8 + $0xc] sm:$0xf]
        %v1307 = vld [vmem:[#allocation8 + $0x10] sm:$0xf]
        %v1308 = vld [vmem:[#allocation8 + $0x14] sm:$0xf]
        %v1309 = vld [vmem:[#allocation8 + $0x18] sm:$0xf]
        %v1310 = vld [vmem:[#allocation8 + $0x1c] sm:$0xf]
        %v1311 = vld [vmem:[#allocation8 + $0x20] sm:$0xf]
        %v1312 = vld [vmem:[#allocation8 + $0x24] sm:$0xf]
        %v1313 = vld [vmem:[#allocation8 + $0x28] sm:$0xf]
        %v1314 = vld [vmem:[#allocation8 + $0x2c] sm:$0xf]
        %v1315 = vld [vmem:[#allocation8 + $0x30] sm:$0xf]
        %v1316 = vld [vmem:[#allocation8 + $0x34] sm:$0xf]
        %v1317 = vld [vmem:[#allocation8 + $0x38] sm:$0xf]
        %v1318 = vld [vmem:[#allocation8 + $0x3c] sm:$0xf]
        %v1319 = vld [vmem:[#allocation8 + $0x40] sm:$0xf]
        %v1320 = vld [vmem:[#allocation8 + $0x44] sm:$0xf]
        %v1321 = vld [vmem:[#allocation8 + $0x48] sm:$0xf]
        %v1322 = vld [vmem:[#allocation8 + $0x4c] sm:$0xf]
        %v1323 = vld [vmem:[#allocation8 + $0x50] sm:$0xf]
        %v1324 = vld [vmem:[#allocation8 + $0x54] sm:$0xf]
        %v1325 = vld [vmem:[#allocation8 + $0x58] sm:$0xf]
        %v1326 = vld [vmem:[#allocation8 + $0x5c] sm:$0xf]
        %v1327 = vld [vmem:[#allocation8 + $0x60] sm:$0xf]
        %v1328 = vld [vmem:[#allocation8 + $0x64] sm:$0xf]
        %v1329 = vld [vmem:[#allocation8 + $0x68] sm:$0xf]
        %v1330 = vld [vmem:[#allocation8 + $0x6c] sm:$0xf]
        %v1331 = vld [vmem:[#allocation8 + $0x70] sm:$0xf]
        %v1332 = vld [vmem:[#allocation8 + $0x74] sm:$0xf]
        %v1333 = vld [vmem:[#allocation8 + $0x78] sm:$0xf]
        %v1334 = vld [vmem:[#allocation8 + $0x7c] sm:$0xf]
        %v1335 = vld [vmem:[%s6] sm:$0x1]
        %v1337 = vlaneseq
        %v1338 = vshrl.u32 %v1337, 7
        %v1339 = vsub.s32 0, %v1338
        %v1340 = vrot.slane %v1335, %v1339
        %v1374 = vunpack.c.l.b16 %v1303
        %v1375 = vunpack.c.l.b16 %v1304
        %v1376 = vunpack.c.l.b16 %v1305
        %v1377 = vunpack.c.l.b16 %v1306
        %v1378 = vunpack.c.l.b16 %v1307
        %v1379 = vunpack.c.l.b16 %v1308
        %v1380 = vunpack.c.l.b16 %v1309
        %v1381 = vunpack.c.l.b16 %v1310
        %v1382 = vunpack.c.l.b16 %v1311
        %v1383 = vunpack.c.l.b16 %v1312
        %v1384 = vunpack.c.l.b16 %v1313
        %v1385 = vunpack.c.l.b16 %v1314
        %v1386 = vunpack.c.l.b16 %v1315
        %v1387 = vunpack.c.l.b16 %v1316
        %v1388 = vunpack.c.l.b16 %v1317
        %v1389 = vunpack.c.l.b16 %v1318
        %v1390 = vunpack.c.l.b16 %v1319
        %v1391 = vunpack.c.l.b16 %v1320
        %v1392 = vunpack.c.l.b16 %v1321
        %v1393 = vunpack.c.l.b16 %v1322
        %v1394 = vunpack.c.l.b16 %v1323
        %v1395 = vunpack.c.l.b16 %v1324
        %v1396 = vunpack.c.l.b16 %v1325
        %v1397 = vunpack.c.l.b16 %v1326
        %v1398 = vunpack.c.l.b16 %v1327
        %v1399 = vunpack.c.l.b16 %v1328
        %v1400 = vunpack.c.l.b16 %v1329
        %v1401 = vunpack.c.l.b16 %v1330
        %v1402 = vunpack.c.l.b16 %v1331
        %v1403 = vunpack.c.l.b16 %v1332
        %v1404 = vunpack.c.l.b16 %v1333
        %v1405 = vunpack.c.l.b16 %v1334
        %v1406 = vpack.c.b16 %v1375, %v1374
        %v1407 = vpack.c.b16 %v1377, %v1376
        %v1408 = vpack.c.b16 %v1379, %v1378
        %v1409 = vpack.c.b16 %v1381, %v1380
        %v1410 = vpack.c.b16 %v1383, %v1382
        %v1411 = vpack.c.b16 %v1385, %v1384
        %v1412 = vpack.c.b16 %v1387, %v1386
        %v1413 = vpack.c.b16 %v1389, %v1388
        %v1414 = vpack.c.b16 %v1391, %v1390
        %v1415 = vpack.c.b16 %v1393, %v1392
        %v1416 = vpack.c.b16 %v1395, %v1394
        %v1417 = vpack.c.b16 %v1397, %v1396
        %v1418 = vpack.c.b16 %v1399, %v1398
        %v1419 = vpack.c.b16 %v1401, %v1400
        %v1420 = vpack.c.b16 %v1403, %v1402
        %v1421 = vpack.c.b16 %v1405, %v1404
        %1438 = vmatprep.subr.bf16.mxu0 0
        %1439 = vmatpush1.bf16.msra.mxu0 %v1406
        %1440 = vmatprep.subr.bf16.mxu0 0
        %1441 = vmatpush1.bf16.msra.mxu0 %v1407
        %1442 = vmatprep.subr.bf16.mxu0 0
        %1443 = vmatpush1.bf16.msra.mxu0 %v1408
        %1444 = vmatprep.subr.bf16.mxu0 0
        %1445 = vmatpush1.bf16.msra.mxu0 %v1409
        %1446 = vmatprep.subr.bf16.mxu0 0
        %1447 = vmatpush1.bf16.msra.mxu0 %v1410
        %1448 = vmatprep.subr.bf16.mxu0 0
        %1449 = vmatpush1.bf16.msra.mxu0 %v1411
        %1450 = vmatprep.subr.bf16.mxu0 0
        %1451 = vmatpush1.bf16.msra.mxu0 %v1412
        %1452 = vmatprep.subr.bf16.mxu0 0
        %1453 = vmatpush1.bf16.msra.mxu0 %v1413
        %1454 = vmatprep.subr.bf16.mxu0 0
        %1455 = vmatpush1.bf16.msra.mxu0 %v1414
        %1456 = vmatprep.subr.bf16.mxu0 0
        %1457 = vmatpush1.bf16.msra.mxu0 %v1415
        %1458 = vmatprep.subr.bf16.mxu0 0
        %1459 = vmatpush1.bf16.msra.mxu0 %v1416
        %1460 = vmatprep.subr.bf16.mxu0 0
        %1461 = vmatpush1.bf16.msra.mxu0 %v1417
        %1462 = vmatprep.subr.bf16.mxu0 0
        %1463 = vmatpush1.bf16.msra.mxu0 %v1418
        %1464 = vmatprep.subr.bf16.mxu0 0
        %1465 = vmatpush1.bf16.msra.mxu0 %v1419
        %1466 = vmatprep.subr.bf16.mxu0 0
        %1467 = vmatpush1.bf16.msra.mxu0 %v1420
        %1468 = vmatprep.subr.bf16.mxu0 0
        %1469 = vmatpush1.bf16.msra.mxu0 %v1421
        %1470 = vmatprep.mubr.bf16.mxu0 %v1302
        %1471 = vmatmul.mubr.bf16.gmra.mrb[0].mxu0 %v1301
        %v1472 = vpop.f32.mrb[0].mxu0
        %v1473 = vadd.f32 %v1340, %v1472
        %v1474 = vpop.f32.mrb[0].mxu0
        %v1475 = vpop.f32.mrb[0].mxu0
        %v1476 = vpop.f32.mrb[0].mxu0
        %1477 = vdwg.mxu0
        %v1478 = vmax.f32 %v1473, 0.0
        %v1479 = vpack.c.bf16 %v1478, %v1478
        %v1480 = vld [vmem:[#allocation10] sm:$0xf]
        %v1481 = vld [vmem:[#allocation10 + $0x4] sm:$0xf]
        %v1482 = vld [vmem:[#allocation10 + $0x8] sm:$0xf]
        %v1483 = vld [vmem:[#allocation10 + $0xc] sm:$0xf]
        %v1484 = vld [vmem:[#allocation10 + $0x10] sm:$0xf]
        %v1485 = vld [vmem:[#allocation10 + $0x14] sm:$0xf]
        %v1486 = vld [vmem:[#allocation10 + $0x18] sm:$0xf]
        %v1487 = vld [vmem:[#allocation10 + $0x1c] sm:$0xf]
        %v1488 = vld [vmem:[#allocation10 + $0x20] sm:$0xf]
        %v1489 = vld [vmem:[#allocation10 + $0x24] sm:$0xf]
        %v1490 = vld [vmem:[#allocation10 + $0x28] sm:$0xf]
        %v1491 = vld [vmem:[#allocation10 + $0x2c] sm:$0xf]
        %v1492 = vld [vmem:[#allocation10 + $0x30] sm:$0xf]
        %v1493 = vld [vmem:[#allocation10 + $0x34] sm:$0xf]
        %v1494 = vld [vmem:[#allocation10 + $0x38] sm:$0xf]
        %v1495 = vld [vmem:[#allocation10 + $0x3c] sm:$0xf]
        %v1496 = vld [vmem:[%s8] sm:$0x1]
        %v1498 = vlaneseq
        %v1499 = vshrl.u32 %v1498, 7
        %v1500 = vsub.s32 0, %v1499
        %v1501 = vrot.slane %v1496, %v1500
        %v1519 = vunpack.c.l.b16 %v1480
        %v1520 = vunpack.c.l.b16 %v1481
        %v1521 = vunpack.c.l.b16 %v1482
        %v1522 = vunpack.c.l.b16 %v1483
        %v1523 = vunpack.c.l.b16 %v1484
        %v1524 = vunpack.c.l.b16 %v1485
        %v1525 = vunpack.c.l.b16 %v1486
        %v1526 = vunpack.c.l.b16 %v1487
        %v1527 = vunpack.c.l.b16 %v1488
        %v1528 = vunpack.c.l.b16 %v1489
        %v1529 = vunpack.c.l.b16 %v1490
        %v1530 = vunpack.c.l.b16 %v1491
        %v1531 = vunpack.c.l.b16 %v1492
        %v1532 = vunpack.c.l.b16 %v1493
        %v1533 = vunpack.c.l.b16 %v1494
        %v1534 = vunpack.c.l.b16 %v1495
        %v1535 = vpack.c.b16 %v1520, %v1519
        %v1536 = vpack.c.b16 %v1522, %v1521
        %v1537 = vpack.c.b16 %v1524, %v1523
        %v1538 = vpack.c.b16 %v1526, %v1525
        %v1539 = vpack.c.b16 %v1528, %v1527
        %v1540 = vpack.c.b16 %v1530, %v1529
        %v1541 = vpack.c.b16 %v1532, %v1531
        %v1542 = vpack.c.b16 %v1534, %v1533
        %1551 = vmatprep.subr.bf16.mxu0 0
        %1552 = vmatpush1.bf16.msra.mxu0 %v1535
        %1553 = vmatprep.subr.bf16.mxu0 0
        %1554 = vmatpush1.bf16.msra.mxu0 %v1536
        %1555 = vmatprep.subr.bf16.mxu0 0
        %1556 = vmatpush1.bf16.msra.mxu0 %v1537
        %1557 = vmatprep.subr.bf16.mxu0 0
        %1558 = vmatpush1.bf16.msra.mxu0 %v1538
        %1559 = vmatprep.subr.bf16.mxu0 0
        %1560 = vmatpush1.bf16.msra.mxu0 %v1539
        %1561 = vmatprep.subr.bf16.mxu0 0
        %1562 = vmatpush1.bf16.msra.mxu0 %v1540
        %1563 = vmatprep.subr.bf16.mxu0 0
        %1564 = vmatpush1.bf16.msra.mxu0 %v1541
        %1565 = vmatprep.subr.bf16.mxu0 0
        %1566 = vmatpush1.bf16.msra.mxu0 %v1542
        %1567 = vmatprep.subr.bf16.mxu0 0
        %1568 = vmatpush1.bf16.msra.mxu0 0
        %1569 = vmatprep.subr.bf16.mxu0 0
        %1570 = vmatpush1.bf16.msra.mxu0 0
        %1571 = vmatprep.subr.bf16.mxu0 0
        %1572 = vmatpush1.bf16.msra.mxu0 0
        %1573 = vmatprep.subr.bf16.mxu0 0
        %1574 = vmatpush1.bf16.msra.mxu0 0
        %1575 = vmatprep.subr.bf16.mxu0 0
        %1576 = vmatpush1.bf16.msra.mxu0 0
        %1577 = vmatprep.subr.bf16.mxu0 0
        %1578 = vmatpush1.bf16.msra.mxu0 0
        %1579 = vmatprep.subr.bf16.mxu0 0
        %1580 = vmatpush1.bf16.msra.mxu0 0
        %1581 = vmatprep.subr.bf16.mxu0 0
        %1582 = vmatpush1.bf16.msra.mxu0 0
        %1583 = vmatprep.mubr.bf16.mxu0 0
        %1584 = vmatmul.mubr.bf16.gmra.mrb[0].mxu0 %v1479
        %v1585 = vpop.f32.mrb[0].mxu0
        %v1586 = vadd.f32 %v1501, %v1585
        %v1587 = vpop.f32.mrb[0].mxu0
        %v1588 = vpop.f32.mrb[0].mxu0
        %v1589 = vpop.f32.mrb[0].mxu0
        %1590 = vdwg.mxu0
        %v1591 = vadd.f32 %v1586, %v808
        %1592 = vst [vmem:[%s405] sm:$0xff] %v1591
        %s1593 = sand.u32 %s230, 1
        %s1594 = scalar_lea.sflag [#allocation4], %s1593
        %s1595 = sand.u32 %s230, 1
        %s1596 = smul.addr %s1595, 8
        %s1597 = scalar_lea.vmem [#allocation11], %s1596
        // Predicated region
        $region77: #{tpu_custom_call.1} parent=55 // pred_check
          %p1598 = pneg %p240
        $region78: #{tpu_custom_call.1} parent=55 // pred_check_branch
          %1600 = sbr.rel (%p1598) target = $region80
        $region79: #{tpu_custom_call.1} parent=55 // pred_region
          %s1602 = ssub.s32 128, 128
          %1603 = vsyncadd %s1594, %s1602
          %s1604 = smul.addr %s28, 128
          %s1605 = scalar_lea.hbm %s9, %s1604
          %s1607 = sshll.u32 %s1597, 4
          %s1608 = int_to_ptr.vmem [resolvable:$true] %s1607
          %1610 = dma.vmem_to_hbm [thread:$0]  %s1608, 128, %s1605, %s1594
        $region80: #{tpu_custom_call.1} parent=55 // pred_fallthru
          _
      $region56: #{tpu_custom_call.1} parent=5 // pred_fallthru
        _
      %p1611 = scmp.le.s32.totalorder 2, %s23
      // Predicated region
      $region81: #{tpu_custom_call.1} parent=5 // pred_check
        %p1612 = pneg %p1611
      $region82: #{tpu_custom_call.1} parent=5 // pred_check_branch
        %1614 = sbr.rel (%p1612) target = $region84
      $region83: #{tpu_custom_call.1} parent=5 // pred_region
        %s1615 = ssub.s32 %s23, 2
        // Predicated region
        $region85: #{tpu_custom_call.1} parent=83 // pred_check
          %p1616 = pneg %p246
        $region86: #{tpu_custom_call.1} parent=83 // pred_check_branch
          %1618 = sbr.rel (%p1616) target = $region88
        $region87: #{tpu_custom_call.1} parent=83 // pred_region
          %s1619 = sand.u32 %s231, 1
          %s1620 = scalar_lea.sflag [#allocation4], %s1619
          %s1621 = sand.u32 %s231, 1
          %s1622 = smul.addr %s1621, 8
          %s1623 = scalar_lea.vmem [#allocation11], %s1622
          %1624 = dma.done %s1620, 128
        $region88: #{tpu_custom_call.1} parent=83 // pred_fallthru
          _
      $region84: #{tpu_custom_call.1} parent=5 // pred_fallthru
        _
    $region6: #{tpu_custom_call.1} parent=1 // loop_footer
      %s27 = sadd.s32 1, %s23
    $region7: #{tpu_custom_call.1} parent=1 // loop_footer_branch
      %22 = sbr.rel target = $region3
    $region8: #{tpu_custom_call.1} parent=1 // loop_exit
      _
    %1625 = vsyncpa [#allocation3], 1
    %s1626 = scalar_lea.sflag [#allocation3], 1
    %1627 = vsyncpa %s1626, 1
    %1628 = vsyncpa [#allocation6], 1
    %1629 = vsyncpa [#allocation9], 1
    %1630 = vsyncpa [#allocation4], 1
    %s1631 = scalar_lea.sflag [#allocation4], 1
    %1632 = vsyncpa %s1631, 1

</llo_original>
